<compile_context>
chip_gen: v7x
topology: tpu7x:2x2x1
jax: 0.10.0
libtpu: 0.0.40
codegen_flags: <defaults>
</compile_context>

<pallas_src>
import functools

import jax
import jax.numpy as jnp
from jax.experimental import pallas as pl
from jax.experimental.pallas import tpu as pltpu

X_DIM = 784
HIDDEN_DIM = 400
LATENT_DIM = 20
MOM_PAD = 128  # 2*LATENT_DIM = 40 padded to one full lane width (unmasked vst)


def _round_up(n, m):
    return (n + m - 1) // m * m


def vae_kernel(
    x_ref, eps_ref,
    w_in_ref, b_in_ref,        # encoder FC_input:        784 -> 400
    w_mulv_ref, b_mulv_ref,    # fused FC_mean|FC_var:    400 -> 128 (40 real + pad)
    w_d1_ref, b_d1_ref,        # decoder FC_hidden:        20 -> 400
    w_d2_ref, b_d2_ref,        # decoder FC_output:       400 -> 784
    xhat_ref, mom_ref,
):
    x = x_ref[...]

    # ---- Encoder ----
    h = jnp.dot(x, w_in_ref[...], preferred_element_type=jnp.float32) + b_in_ref[...]
    h = jnp.maximum(h, 0.0)  # relu

    # Single fused matmul for [mean | log_var | zero-pad]  ->  (tm, 128)
    moments = (
        jnp.dot(h, w_mulv_ref[...], preferred_element_type=jnp.float32)
        + b_mulv_ref[...]
    )
    mom_ref[...] = moments  # lane-dense (tm, 128) store; wrapper slices 20/20

    mean = moments[:, :LATENT_DIM]
    log_var = moments[:, LATENT_DIM:2 * LATENT_DIM]

    # reparameterization trick: z = mean + exp(0.5 * log_var) * eps
    z = mean + jnp.exp(0.5 * log_var) * eps_ref[...]

    # ---- Decoder ----
    hd = jnp.dot(z, w_d1_ref[...], preferred_element_type=jnp.float32) + b_d1_ref[...]
    hd = jnp.maximum(hd, 0.0)  # relu
    logits = (
        jnp.dot(hd, w_d2_ref[...], preferred_element_type=jnp.float32)
        + b_d2_ref[...]
    )
    xhat_ref[...] = jax.nn.sigmoid(logits)


def _batch_spec(tm, feat):
    return pl.BlockSpec((tm, feat), lambda i: (i, 0))


def _const_spec(arr):
    # Full-array block, constant index -> VMEM-resident, DMA'd once.
    return pl.BlockSpec(arr.shape, lambda i: (0, 0))


@functools.partial(jax.jit, static_argnames=("block_batch",))
def vae_forward(x, eps, packed_params, block_batch=512):
    """packed_params: (w_in, b_in, w_mulv, b_mulv, w_d1, b_d1, w_d2, b_d2).

    block_batch: rows of the batch processed per grid step (>=8). 512 keeps the
    per-step footprint (~14 MB incl. double buffering) inside default scoped
    VMEM on all of v5e/v6e/v7x while filling the MXU M dimension.
    """
    w_in, b_in, w_mulv, b_mulv, w_d1, b_d1, w_d2, b_d2 = packed_params
    B = x.shape[0]
    tm = min(block_batch, _round_up(B, 8))
    Bp = _round_up(B, tm)
    if Bp != B:
        x = jnp.pad(x, ((0, Bp - B), (0, 0)))
        eps = jnp.pad(eps, ((0, Bp - B), (0, 0)))

    xhat_p, moments = pl.pallas_call(
        vae_kernel,
        grid=(Bp // tm,),
        out_shape=(
            jax.ShapeDtypeStruct((Bp, X_DIM), jnp.float32),    # x_hat
            jax.ShapeDtypeStruct((Bp, MOM_PAD), jnp.float32),  # [mean | log_var | pad]
        ),
        in_specs=[
            _batch_spec(tm, X_DIM),       # x
            _batch_spec(tm, LATENT_DIM),  # eps
            _const_spec(w_in), _const_spec(b_in),
            _const_spec(w_mulv), _const_spec(b_mulv),
            _const_spec(w_d1), _const_spec(b_d1),
            _const_spec(w_d2), _const_spec(b_d2),
        ],
        out_specs=(
            _batch_spec(tm, X_DIM),
            _batch_spec(tm, MOM_PAD),
        ),
        compiler_params=pltpu.CompilerParams(
            dimension_semantics=("parallel",),       # megacore-shard batch on v7x
            vmem_limit_bytes=32 * 1024 * 1024,
        ),
    )(x, eps, w_in, b_in, w_mulv, b_mulv, w_d1, b_d1, w_d2, b_d2)

    x_hat = xhat_p[:B]
    mean = moments[:B, :LATENT_DIM]
    log_var = moments[:B, LATENT_DIM:2 * LATENT_DIM]
    return x_hat, mean, log_var


def _init_linear(key, fan_in, fan_out):
    """PyTorch-default-style init: U(-1/sqrt(fan_in), 1/sqrt(fan_in)).
    Weight returned as (fan_in, fan_out) (already transposed for x @ W)."""
    kw, kb = jax.random.split(key)
    bound = 1.0 / (fan_in ** 0.5)
    w = jax.random.uniform(kw, (fan_in, fan_out), jnp.float32, -bound, bound)
    b = jax.random.uniform(kb, (1, fan_out), jnp.float32, -bound, bound)
    return w, b


def init_params(key):
    keys = jax.random.split(key, 5)
    w_in, b_in = _init_linear(keys[0], X_DIM, HIDDEN_DIM)        # FC_input
    w_mu, b_mu = _init_linear(keys[1], HIDDEN_DIM, LATENT_DIM)   # FC_mean
    w_lv, b_lv = _init_linear(keys[2], HIDDEN_DIM, LATENT_DIM)   # FC_var
    w_d1, b_d1 = _init_linear(keys[3], LATENT_DIM, HIDDEN_DIM)   # FC_hidden
    w_d2, b_d2 = _init_linear(keys[4], HIDDEN_DIM, X_DIM)        # FC_output
    return (w_in, b_in, w_mu, b_mu, w_lv, b_lv, w_d1, b_d1, w_d2, b_d2)


def pack_params(params):
    """Fuse FC_mean/FC_var into one zero-padded (400, 128) weight + (1, 128) bias."""
    w_in, b_in, w_mu, b_mu, w_lv, b_lv, w_d1, b_d1, w_d2, b_d2 = params
    w_mulv = jnp.concatenate([w_mu, w_lv], axis=1)               # (400, 40)
    b_mulv = jnp.concatenate([b_mu, b_lv], axis=1)               # (1, 40)
    w_mulv = jnp.pad(w_mulv, ((0, 0), (0, MOM_PAD - 2 * LATENT_DIM)))
    b_mulv = jnp.pad(b_mulv, ((0, 0), (0, MOM_PAD - 2 * LATENT_DIM)))
    return (w_in, b_in, w_mulv, b_mulv, w_d1, b_d1, w_d2, b_d2)


def vae_forward_ref(x, eps, params):
    """Pure-JAX reference matching the PyTorch module semantics."""
    w_in, b_in, w_mu, b_mu, w_lv, b_lv, w_d1, b_d1, w_d2, b_d2 = params
    h = jax.nn.relu(x @ w_in + b_in)
    mean = h @ w_mu + b_mu
    log_var = h @ w_lv + b_lv
    z = mean + jnp.exp(0.5 * log_var) * eps
    hd = jax.nn.relu(z @ w_d1 + b_d1)
    x_hat = jax.nn.sigmoid(hd @ w_d2 + b_d2)
    return x_hat, mean, log_var


if __name__ == "__main__":
    key = jax.random.PRNGKey(0)
    k_params, k_x, k_eps, k_x2, k_eps2 = jax.random.split(key, 5)

    params = init_params(k_params)
    packed = pack_params(params)

    # --- small demo batch ---
    B = 8
    x = jax.random.uniform(k_x, (B, X_DIM), jnp.float32)           # MNIST-like pixels
    eps = jax.random.normal(k_eps, (B, LATENT_DIM), jnp.float32)   # torch.randn_like noise

    x_hat, mean, log_var = jax.block_until_ready(vae_forward(x, eps, packed))

    x_hat_r, mean_r, log_var_r = vae_forward_ref(x, eps, params)
    assert x_hat.shape == (B, X_DIM)
    assert mean.shape == (B, LATENT_DIM) and log_var.shape == (B, LATENT_DIM)
    assert jnp.allclose(x_hat, x_hat_r, atol=1e-5)
    assert jnp.allclose(mean, mean_r, atol=1e-5)
    assert jnp.allclose(log_var, log_var_r, atol=1e-5)

    # --- exercise the multi-tile grid path (padding + 2 grid steps) ---
    B2 = 200
    x2 = jax.random.uniform(k_x2, (B2, X_DIM), jnp.float32)
    eps2 = jax.random.normal(k_eps2, (B2, LATENT_DIM), jnp.float32)
    x_hat2, mean2, log_var2 = jax.block_until_ready(
        vae_forward(x2, eps2, packed, block_batch=128))
    x_hat2_r, mean2_r, log_var2_r = vae_forward_ref(x2, eps2, params)
    assert jnp.allclose(x_hat2, x_hat2_r, atol=1e-5)
    assert jnp.allclose(mean2, mean2_r, atol=1e-5)
    assert jnp.allclose(log_var2, log_var2_r, atol=1e-5)

    print("KERNEL_OK")
</pallas_src>

<mosaic_0001>
module attributes {stable_mosaic.version = 11 : i64} {
  func.func @vae_kernel(%arg0: i32, %arg1: memref<8x784xf32, #tpu.memory_space<vmem>>, %arg2: memref<8x20xf32, #tpu.memory_space<vmem>>, %arg3: memref<784x400xf32, #tpu.memory_space<vmem>>, %arg4: memref<1x400xf32, #tpu.memory_space<vmem>>, %arg5: memref<400x128xf32, #tpu.memory_space<vmem>>, %arg6: memref<1x128xf32, #tpu.memory_space<vmem>>, %arg7: memref<20x400xf32, #tpu.memory_space<vmem>>, %arg8: memref<1x400xf32, #tpu.memory_space<vmem>>, %arg9: memref<400x784xf32, #tpu.memory_space<vmem>>, %arg10: memref<1x784xf32, #tpu.memory_space<vmem>>, %arg11: memref<8x784xf32, #tpu.memory_space<vmem>>, %arg12: memref<8x128xf32, #tpu.memory_space<vmem>>) attributes {dimension_semantics = [#tpu.dimension_semantics<parallel>], iteration_bounds = array<i64: 1>, scalar_prefetch = 0 : i64, scratch_operands = 0 : i64, tpu.core_type = #tpu.core_type<tc>, window_params = [{transform_indices = @transform_0, window_bounds = array<i64: 8, 784>}, {transform_indices = @transform_1, window_bounds = array<i64: 8, 20>}, {pipeline_mode = #tpu.pipeline_mode<synchronous>, transform_indices = @transform_2, window_bounds = array<i64: 784, 400>}, {pipeline_mode = #tpu.pipeline_mode<synchronous>, transform_indices = @transform_3, window_bounds = array<i64: 1, 400>}, {pipeline_mode = #tpu.pipeline_mode<synchronous>, transform_indices = @transform_4, window_bounds = array<i64: 400, 128>}, {pipeline_mode = #tpu.pipeline_mode<synchronous>, transform_indices = @transform_5, window_bounds = array<i64: 1, 128>}, {pipeline_mode = #tpu.pipeline_mode<synchronous>, transform_indices = @transform_6, window_bounds = array<i64: 20, 400>}, {pipeline_mode = #tpu.pipeline_mode<synchronous>, transform_indices = @transform_7, window_bounds = array<i64: 1, 400>}, {pipeline_mode = #tpu.pipeline_mode<synchronous>, transform_indices = @transform_8, window_bounds = array<i64: 400, 784>}, {pipeline_mode = #tpu.pipeline_mode<synchronous>, transform_indices = @transform_9, window_bounds = array<i64: 1, 784>}, {transform_indices = @transform_10, window_bounds = array<i64: 8, 784>}, {transform_indices = @transform_11, window_bounds = array<i64: 8, 128>}]} {
    %c0 = arith.constant 0 : index
    %c0_0 = arith.constant 0 : index
    %0 = vector.load %arg1[%c0, %c0_0] : memref<8x784xf32, #tpu.memory_space<vmem>>, vector<8x784xf32>
    %c0_1 = arith.constant 0 : index
    %c0_2 = arith.constant 0 : index
    %1 = vector.load %arg3[%c0_1, %c0_2] : memref<784x400xf32, #tpu.memory_space<vmem>>, vector<784x400xf32>
    %cst = arith.constant dense<0.000000e+00> : vector<8x400xf32>
    %2 = tpu.matmul %0, %1, %cst {dimension_numbers = #tpu.dot_dimension_numbers<[1], [0], [0], [1], [0, 0, 1, 1], [], []>} : vector<8x784xf32>, vector<784x400xf32>, vector<8x400xf32> -> vector<8x400xf32>
    %c0_3 = arith.constant 0 : index
    %c0_4 = arith.constant 0 : index
    %3 = vector.load %arg4[%c0_3, %c0_4] : memref<1x400xf32, #tpu.memory_space<vmem>>, vector<1x400xf32>
    %4 = vector.broadcast %3 : vector<1x400xf32> to vector<8x400xf32>
    %5 = arith.addf %2, %4 : vector<8x400xf32>
    %cst_5 = arith.constant 0.000000e+00 : f32
    %6 = vector.broadcast %cst_5 : f32 to vector<8x400xf32>
    %7 = arith.maximumf %5, %6 : vector<8x400xf32>
    %c0_6 = arith.constant 0 : index
    %c0_7 = arith.constant 0 : index
    %8 = vector.load %arg5[%c0_6, %c0_7] : memref<400x128xf32, #tpu.memory_space<vmem>>, vector<400x128xf32>
    %cst_8 = arith.constant dense<0.000000e+00> : vector<8x128xf32>
    %9 = tpu.matmul %7, %8, %cst_8 {dimension_numbers = #tpu.dot_dimension_numbers<[1], [0], [0], [1], [0, 0, 1, 1], [], []>} : vector<8x400xf32>, vector<400x128xf32>, vector<8x128xf32> -> vector<8x128xf32>
    %c0_9 = arith.constant 0 : index
    %c0_10 = arith.constant 0 : index
    %10 = vector.load %arg6[%c0_9, %c0_10] : memref<1x128xf32, #tpu.memory_space<vmem>>, vector<1x128xf32>
    %11 = vector.broadcast %10 : vector<1x128xf32> to vector<8x128xf32>
    %12 = arith.addf %9, %11 : vector<8x128xf32>
    %c0_11 = arith.constant 0 : index
    %c0_12 = arith.constant 0 : index
    %13 = vector.load %arg12[%c0_11, %c0_12] : memref<8x128xf32, #tpu.memory_space<vmem>>, vector<8x128xf32>
    tpu.vector_store %arg12[%c0_11, %c0_12], %12 {strides = array<i32>} : memref<8x128xf32, #tpu.memory_space<vmem>>, vector<8x128xf32>,
    %14 = vector.extract_strided_slice %12 {offsets = [0, 0], sizes = [8, 20], strides = [1, 1]} : vector<8x128xf32> to vector<8x20xf32>
    %15 = vector.extract_strided_slice %12 {offsets = [0, 20], sizes = [8, 20], strides = [1, 1]} : vector<8x128xf32> to vector<8x20xf32>
    %cst_13 = arith.constant 5.000000e-01 : f32
    %16 = vector.broadcast %cst_13 : f32 to vector<8x20xf32>
    %17 = arith.mulf %16, %15 : vector<8x20xf32>
    %18 = math.exp %17 : vector<8x20xf32>
    %c0_14 = arith.constant 0 : index
    %c0_15 = arith.constant 0 : index
    %19 = vector.load %arg2[%c0_14, %c0_15] : memref<8x20xf32, #tpu.memory_space<vmem>>, vector<8x20xf32>
    %20 = arith.mulf %18, %19 : vector<8x20xf32>
    %21 = arith.addf %14, %20 : vector<8x20xf32>
    %c0_16 = arith.constant 0 : index
    %c0_17 = arith.constant 0 : index
    %22 = vector.load %arg7[%c0_16, %c0_17] : memref<20x400xf32, #tpu.memory_space<vmem>>, vector<20x400xf32>
    %cst_18 = arith.constant dense<0.000000e+00> : vector<8x400xf32>
    %23 = tpu.matmul %21, %22, %cst_18 {dimension_numbers = #tpu.dot_dimension_numbers<[1], [0], [0], [1], [0, 0, 1, 1], [], []>} : vector<8x20xf32>, vector<20x400xf32>, vector<8x400xf32> -> vector<8x400xf32>
    %c0_19 = arith.constant 0 : index
    %c0_20 = arith.constant 0 : index
    %24 = vector.load %arg8[%c0_19, %c0_20] : memref<1x400xf32, #tpu.memory_space<vmem>>, vector<1x400xf32>
    %25 = vector.broadcast %24 : vector<1x400xf32> to vector<8x400xf32>
    %26 = arith.addf %23, %25 : vector<8x400xf32>
    %cst_21 = arith.constant 0.000000e+00 : f32
    %27 = vector.broadcast %cst_21 : f32 to vector<8x400xf32>
    %28 = arith.maximumf %26, %27 : vector<8x400xf32>
    %c0_22 = arith.constant 0 : index
    %c0_23 = arith.constant 0 : index
    %29 = vector.load %arg9[%c0_22, %c0_23] : memref<400x784xf32, #tpu.memory_space<vmem>>, vector<400x784xf32>
    %cst_24 = arith.constant dense<0.000000e+00> : vector<8x784xf32>
    %30 = tpu.matmul %28, %29, %cst_24 {dimension_numbers = #tpu.dot_dimension_numbers<[1], [0], [0], [1], [0, 0, 1, 1], [], []>} : vector<8x400xf32>, vector<400x784xf32>, vector<8x784xf32> -> vector<8x784xf32>
    %c0_25 = arith.constant 0 : index
    %c0_26 = arith.constant 0 : index
    %31 = vector.load %arg10[%c0_25, %c0_26] : memref<1x784xf32, #tpu.memory_space<vmem>>, vector<1x784xf32>
    %32 = vector.broadcast %31 : vector<1x784xf32> to vector<8x784xf32>
    %33 = arith.addf %30, %32 : vector<8x784xf32>
    %34 = arith.negf %33 : vector<8x784xf32>
    %35 = math.exp %34 : vector<8x784xf32>
    %cst_27 = arith.constant 1.000000e+00 : f32
    %36 = vector.broadcast %cst_27 : f32 to vector<8x784xf32>
    %37 = arith.addf %36, %35 : vector<8x784xf32>
    %38 = arith.divf %36, %37 : vector<8x784xf32>
    %c0_28 = arith.constant 0 : index
    %c0_29 = arith.constant 0 : index
    %39 = vector.load %arg11[%c0_28, %c0_29] : memref<8x784xf32, #tpu.memory_space<vmem>>, vector<8x784xf32>
    tpu.vector_store %arg11[%c0_28, %c0_29], %38 {strides = array<i32>} : memref<8x784xf32, #tpu.memory_space<vmem>>, vector<8x784xf32>,
    return
  }
  func.func @transform_0(%arg0: i32) -> (i32, i32) {
    %c0_i32 = arith.constant 0 : i32
    %c0_i32_0 = arith.constant 0 : i32
    return %arg0, %c0_i32 : i32, i32
  }
  func.func @transform_1(%arg0: i32) -> (i32, i32) {
    %c0_i32 = arith.constant 0 : i32
    %c0_i32_0 = arith.constant 0 : i32
    return %arg0, %c0_i32 : i32, i32
  }
  func.func @transform_2(%arg0: i32) -> (i32, i32) {
    %c0_i32 = arith.constant 0 : i32
    %c0_i32_0 = arith.constant 0 : i32
    %c0_i32_1 = arith.constant 0 : i32
    return %c0_i32, %c0_i32_0 : i32, i32
  }
  func.func @transform_3(%arg0: i32) -> (i32, i32) {
    %c0_i32 = arith.constant 0 : i32
    %c0_i32_0 = arith.constant 0 : i32
    %c0_i32_1 = arith.constant 0 : i32
    return %c0_i32, %c0_i32_0 : i32, i32
  }
  func.func @transform_4(%arg0: i32) -> (i32, i32) {
    %c0_i32 = arith.constant 0 : i32
    %c0_i32_0 = arith.constant 0 : i32
    %c0_i32_1 = arith.constant 0 : i32
    return %c0_i32, %c0_i32_0 : i32, i32
  }
  func.func @transform_5(%arg0: i32) -> (i32, i32) {
    %c0_i32 = arith.constant 0 : i32
    %c0_i32_0 = arith.constant 0 : i32
    %c0_i32_1 = arith.constant 0 : i32
    return %c0_i32, %c0_i32_0 : i32, i32
  }
  func.func @transform_6(%arg0: i32) -> (i32, i32) {
    %c0_i32 = arith.constant 0 : i32
    %c0_i32_0 = arith.constant 0 : i32
    %c0_i32_1 = arith.constant 0 : i32
    return %c0_i32, %c0_i32_0 : i32, i32
  }
  func.func @transform_7(%arg0: i32) -> (i32, i32) {
    %c0_i32 = arith.constant 0 : i32
    %c0_i32_0 = arith.constant 0 : i32
    %c0_i32_1 = arith.constant 0 : i32
    return %c0_i32, %c0_i32_0 : i32, i32
  }
  func.func @transform_8(%arg0: i32) -> (i32, i32) {
    %c0_i32 = arith.constant 0 : i32
    %c0_i32_0 = arith.constant 0 : i32
    %c0_i32_1 = arith.constant 0 : i32
    return %c0_i32, %c0_i32_0 : i32, i32
  }
  func.func @transform_9(%arg0: i32) -> (i32, i32) {
    %c0_i32 = arith.constant 0 : i32
    %c0_i32_0 = arith.constant 0 : i32
    %c0_i32_1 = arith.constant 0 : i32
    return %c0_i32, %c0_i32_0 : i32, i32
  }
  func.func @transform_10(%arg0: i32) -> (i32, i32) {
    %c0_i32 = arith.constant 0 : i32
    %c0_i32_0 = arith.constant 0 : i32
    return %arg0, %c0_i32 : i32, i32
  }
  func.func @transform_11(%arg0: i32) -> (i32, i32) {
    %c0_i32 = arith.constant 0 : i32
    %c0_i32_0 = arith.constant 0 : i32
    return %arg0, %c0_i32 : i32, i32
  }
}

</mosaic_0001>

<llo_original>
// kernel: vae_forward.1
$region0: #{vae_forward.1}
  #allocation0 [shape = 'u32[]', space=smem, size = 0x4, offset = 0x4, fixed_abs, tag = 'smem constant byte address 0x4 - core index']
  #allocation1 [shape = 'u32[144,128]{1,0:T(1,128)}', space=vmem, size = 0x12000, scoped, tag = 'internal scratch']
  %s0 = inlined_call_operand.vmem [shape: f32[8,784], index: 0, kind: input, shape index: {}]
  %s1 = inlined_call_operand.vmem [shape: f32[8,20], index: 1, kind: input, shape index: {}]
  %s2 = inlined_call_operand.vmem [shape: f32[784,400], index: 2, kind: input, shape index: {}]
  %s3 = inlined_call_operand.vmem [shape: f32[1,400], index: 3, kind: input, shape index: {}]
  %s4 = inlined_call_operand.vmem [shape: f32[400,128], index: 4, kind: input, shape index: {}]
  %s5 = inlined_call_operand.vmem [shape: f32[1,128], index: 5, kind: input, shape index: {}]
  %s6 = inlined_call_operand.vmem [shape: f32[20,400], index: 6, kind: input, shape index: {}]
  %s7 = inlined_call_operand.vmem [shape: f32[1,400], index: 7, kind: input, shape index: {}]
  %s8 = inlined_call_operand.vmem [shape: f32[400,784], index: 8, kind: input, shape index: {}]
  %s9 = inlined_call_operand.vmem [shape: f32[1,784], index: 9, kind: input, shape index: {}]
  %s10 = inlined_call_operand.hbm [shape: f32[8,784], index: 10, kind: output, shape index: {0}]
  %s11 = inlined_call_operand.vmem [shape: f32[8,128], index: 11, kind: output, shape index: {1}]
  %12 = xla_tuple %s10, %s11
  %s13 = sld [smem:[#allocation0]]
  $region58: #{vae_forward.1} parent=0
    _
  %s15 = ssub.s32 1, %s13
  %s16 = scalar_select 0, %s15, %s13
  $region1: #{vae_forward.1} parent=0
    #allocation2 [shape = 'u8[28672]{0}', space=vmem, size = 0x7000, scoped, tag = 'output window, operand 0, single buffered']
    #allocation3 [shape = 's32[1]{0}', space=sflag, size = 0x4, scoped, tag = 'scoped memory for vae_forward.1']
    %17 = vsyncpa [#allocation3], 0
    // Predicated region
    $region2: #{vae_forward.1} parent=1 // pred_check
      _
    $region3: #{vae_forward.1} parent=1 // pred_check_branch
      %19 = sbr.rel (0) target = $region5
    $region4: #{vae_forward.1} parent=1 // pred_region
      _
    $region5: #{vae_forward.1} parent=1 // pred_fallthru
      _
    // Predicated region
    $region6: #{vae_forward.1} parent=1 // pred_check
      _
    $region7: #{vae_forward.1} parent=1 // pred_check_branch
      %21 = sbr.rel (0) target = $region9
    $region8: #{vae_forward.1} parent=1 // pred_region
      _
    $region9: #{vae_forward.1} parent=1 // pred_fallthru
      _
    // Predicated region
    $region10: #{vae_forward.1} parent=1 // pred_check
      _
    $region11: #{vae_forward.1} parent=1 // pred_check_branch
      %23 = sbr.rel (0) target = $region13
    $region12: #{vae_forward.1} parent=1 // pred_region
      _
    $region13: #{vae_forward.1} parent=1 // pred_fallthru
      _
    // Predicated region
    $region14: #{vae_forward.1} parent=1 // pred_check
      _
    $region15: #{vae_forward.1} parent=1 // pred_check_branch
      %25 = sbr.rel (0) target = $region17
    $region16: #{vae_forward.1} parent=1 // pred_region
      _
    $region17: #{vae_forward.1} parent=1 // pred_fallthru
      _
    // Predicated region
    $region18: #{vae_forward.1} parent=1 // pred_check
      _
    $region19: #{vae_forward.1} parent=1 // pred_check_branch
      %27 = sbr.rel (0) target = $region21
    $region20: #{vae_forward.1} parent=1 // pred_region
      _
    $region21: #{vae_forward.1} parent=1 // pred_fallthru
      _
    // Predicated region
    $region22: #{vae_forward.1} parent=1 // pred_check
      _
    $region23: #{vae_forward.1} parent=1 // pred_check_branch
      %29 = sbr.rel (0) target = $region25
    $region24: #{vae_forward.1} parent=1 // pred_region
      _
    $region25: #{vae_forward.1} parent=1 // pred_fallthru
      _
    // Predicated region
    $region26: #{vae_forward.1} parent=1 // pred_check
      _
    $region27: #{vae_forward.1} parent=1 // pred_check_branch
      %31 = sbr.rel (0) target = $region29
    $region28: #{vae_forward.1} parent=1 // pred_region
      _
    $region29: #{vae_forward.1} parent=1 // pred_fallthru
      _
    // Predicated region
    $region30: #{vae_forward.1} parent=1 // pred_check
      _
    $region31: #{vae_forward.1} parent=1 // pred_check_branch
      %33 = sbr.rel (0) target = $region33
    $region32: #{vae_forward.1} parent=1 // pred_region
      _
    $region33: #{vae_forward.1} parent=1 // pred_fallthru
      _
    // Predicated region
    $region34: #{vae_forward.1} parent=1 // pred_check
      _
    $region35: #{vae_forward.1} parent=1 // pred_check_branch
      %35 = sbr.rel (0) target = $region37
    $region36: #{vae_forward.1} parent=1 // pred_region
      _
    $region37: #{vae_forward.1} parent=1 // pred_fallthru
      _
    // Predicated region
    $region38: #{vae_forward.1} parent=1 // pred_check
      _
    $region39: #{vae_forward.1} parent=1 // pred_check_branch
      %37 = sbr.rel (0) target = $region41
    $region40: #{vae_forward.1} parent=1 // pred_region
      _
    $region41: #{vae_forward.1} parent=1 // pred_fallthru
      _
    %v38 = vld [vmem:[%s0] sm:$0xff]
    %v39 = vld [vmem:[%s0 + $0x8] sm:$0xff]
    %v40 = vld [vmem:[%s0 + $0x10] sm:$0xff]
    %v41 = vld [vmem:[%s0 + $0x18] sm:$0xff]
    %v42 = vld [vmem:[%s0 + $0x20] sm:$0xff]
    %v43 = vld [vmem:[%s0 + $0x28] sm:$0xff]
    %v44 = vld [vmem:[%s0 + $0x30] sm:$0xff]
    %v45 = vld [vmem:[%s2] sm:$0xff]
    %v46 = vld [vmem:[%s2 + $0x8] sm:$0xff]
    %v47 = vld [vmem:[%s2 + $0x10] sm:$0xff]
    %v48 = vld [vmem:[%s2 + $0x18] sm:$0xff]
    %v49 = vld [vmem:[%s2 + $0x20] sm:$0xff]
    %v50 = vld [vmem:[%s2 + $0x28] sm:$0xff]
    %v51 = vld [vmem:[%s2 + $0x30] sm:$0xff]
    %v52 = vld [vmem:[%s2 + $0x38] sm:$0xff]
    %v53 = vld [vmem:[%s2 + $0x40] sm:$0xff]
    %v54 = vld [vmem:[%s2 + $0x48] sm:$0xff]
    %v55 = vld [vmem:[%s2 + $0x50] sm:$0xff]
    %v56 = vld [vmem:[%s2 + $0x58] sm:$0xff]
    %v57 = vld [vmem:[%s2 + $0x60] sm:$0xff]
    %v58 = vld [vmem:[%s2 + $0x68] sm:$0xff]
    %v59 = vld [vmem:[%s2 + $0x70] sm:$0xff]
    %v60 = vld [vmem:[%s2 + $0x78] sm:$0xff]
    %v61 = vld [vmem:[%s2 + $0x80] sm:$0xff]
    %v62 = vld [vmem:[%s2 + $0x88] sm:$0xff]
    %v63 = vld [vmem:[%s2 + $0x90] sm:$0xff]
    %v64 = vld [vmem:[%s2 + $0x98] sm:$0xff]
    %v65 = vld [vmem:[%s2 + $0xa0] sm:$0xff]
    %v66 = vld [vmem:[%s2 + $0xa8] sm:$0xff]
    %v67 = vld [vmem:[%s2 + $0xb0] sm:$0xff]
    %v68 = vld [vmem:[%s2 + $0xb8] sm:$0xff]
    %v69 = vld [vmem:[%s2 + $0xc0] sm:$0xff]
    %v70 = vld [vmem:[%s2 + $0xc8] sm:$0xff]
    %v71 = vld [vmem:[%s2 + $0xd0] sm:$0xff]
    %v72 = vld [vmem:[%s2 + $0xd8] sm:$0xff]
    %v73 = vld [vmem:[%s2 + $0xe0] sm:$0xff]
    %v74 = vld [vmem:[%s2 + $0xe8] sm:$0xff]
    %v75 = vld [vmem:[%s2 + $0xf0] sm:$0xff]
    %v76 = vld [vmem:[%s2 + $0xf8] sm:$0xff]
    %v77 = vld [vmem:[%s2 + $0x100] sm:$0xff]
    %v78 = vld [vmem:[%s2 + $0x108] sm:$0xff]
    %v79 = vld [vmem:[%s2 + $0x110] sm:$0xff]
    %v80 = vld [vmem:[%s2 + $0x118] sm:$0xff]
    %v81 = vld [vmem:[%s2 + $0x120] sm:$0xff]
    %v82 = vld [vmem:[%s2 + $0x128] sm:$0xff]
    %v83 = vld [vmem:[%s2 + $0x130] sm:$0xff]
    %v84 = vld [vmem:[%s2 + $0x138] sm:$0xff]
    %v85 = vld [vmem:[%s2 + $0x140] sm:$0xff]
    %v86 = vld [vmem:[%s2 + $0x148] sm:$0xff]
    %v87 = vld [vmem:[%s2 + $0x150] sm:$0xff]
    %v88 = vld [vmem:[%s2 + $0x158] sm:$0xff]
    %v89 = vld [vmem:[%s2 + $0x160] sm:$0xff]
    %v90 = vld [vmem:[%s2 + $0x168] sm:$0xff]
    %v91 = vld [vmem:[%s2 + $0x170] sm:$0xff]
    %v92 = vld [vmem:[%s2 + $0x178] sm:$0xff]
    %v93 = vld [vmem:[%s2 + $0x180] sm:$0xff]
    %v94 = vld [vmem:[%s2 + $0x188] sm:$0xff]
    %v95 = vld [vmem:[%s2 + $0x190] sm:$0xff]
    %v96 = vld [vmem:[%s2 + $0x198] sm:$0xff]
    %v97 = vld [vmem:[%s2 + $0x1a0] sm:$0xff]
    %v98 = vld [vmem:[%s2 + $0x1a8] sm:$0xff]
    %v99 = vld [vmem:[%s2 + $0x1b0] sm:$0xff]
    %v100 = vld [vmem:[%s2 + $0x1b8] sm:$0xff]
    %v101 = vld [vmem:[%s2 + $0x1c0] sm:$0xff]
    %v102 = vld [vmem:[%s2 + $0x1c8] sm:$0xff]
    %v103 = vld [vmem:[%s2 + $0x1d0] sm:$0xff]
    %v104 = vld [vmem:[%s2 + $0x1d8] sm:$0xff]
    %v105 = vld [vmem:[%s2 + $0x1e0] sm:$0xff]
    %v106 = vld [vmem:[%s2 + $0x1e8] sm:$0xff]
    %v107 = vld [vmem:[%s2 + $0x1f0] sm:$0xff]
    %v108 = vld [vmem:[%s2 + $0x1f8] sm:$0xff]
    %v109 = vld [vmem:[%s2 + $0x200] sm:$0xff]
    %v110 = vld [vmem:[%s2 + $0x208] sm:$0xff]
    %v111 = vld [vmem:[%s2 + $0x210] sm:$0xff]
    %v112 = vld [vmem:[%s2 + $0x218] sm:$0xff]
    %v113 = vld [vmem:[%s2 + $0x220] sm:$0xff]
    %v114 = vld [vmem:[%s2 + $0x228] sm:$0xff]
    %v115 = vld [vmem:[%s2 + $0x230] sm:$0xff]
    %v116 = vld [vmem:[%s2 + $0x238] sm:$0xff]
    %v117 = vld [vmem:[%s2 + $0x240] sm:$0xff]
    %v118 = vld [vmem:[%s2 + $0x248] sm:$0xff]
    %v119 = vld [vmem:[%s2 + $0x250] sm:$0xff]
    %v120 = vld [vmem:[%s2 + $0x258] sm:$0xff]
    %v121 = vld [vmem:[%s2 + $0x260] sm:$0xff]
    %v122 = vld [vmem:[%s2 + $0x268] sm:$0xff]
    %v123 = vld [vmem:[%s2 + $0x270] sm:$0xff]
    %v124 = vld [vmem:[%s2 + $0x278] sm:$0xff]
    %v125 = vld [vmem:[%s2 + $0x280] sm:$0xff]
    %v126 = vld [vmem:[%s2 + $0x288] sm:$0xff]
    %v127 = vld [vmem:[%s2 + $0x290] sm:$0xff]
    %v128 = vld [vmem:[%s2 + $0x298] sm:$0xff]
    %v129 = vld [vmem:[%s2 + $0x2a0] sm:$0xff]
    %v130 = vld [vmem:[%s2 + $0x2a8] sm:$0xff]
    %v131 = vld [vmem:[%s2 + $0x2b0] sm:$0xff]
    %v132 = vld [vmem:[%s2 + $0x2b8] sm:$0xff]
    %v133 = vld [vmem:[%s2 + $0x2c0] sm:$0xff]
    %v134 = vld [vmem:[%s2 + $0x2c8] sm:$0xff]
    %v135 = vld [vmem:[%s2 + $0x2d0] sm:$0xff]
    %v136 = vld [vmem:[%s2 + $0x2d8] sm:$0xff]
    %v137 = vld [vmem:[%s2 + $0x2e0] sm:$0xff]
    %v138 = vld [vmem:[%s2 + $0x2e8] sm:$0xff]
    %v139 = vld [vmem:[%s2 + $0x2f0] sm:$0xff]
    %v140 = vld [vmem:[%s2 + $0x2f8] sm:$0xff]
    %v141 = vld [vmem:[%s2 + $0x300] sm:$0xff]
    %v142 = vld [vmem:[%s2 + $0x308] sm:$0xff]
    %v143 = vld [vmem:[%s2 + $0x310] sm:$0xff]
    %v144 = vld [vmem:[%s2 + $0x318] sm:$0xff]
    %v145 = vld [vmem:[%s2 + $0x320] sm:$0xff]
    %v146 = vld [vmem:[%s2 + $0x328] sm:$0xff]
    %v147 = vld [vmem:[%s2 + $0x330] sm:$0xff]
    %v148 = vld [vmem:[%s2 + $0x338] sm:$0xff]
    %v149 = vld [vmem:[%s2 + $0x340] sm:$0xff]
    %v150 = vld [vmem:[%s2 + $0x348] sm:$0xff]
    %v151 = vld [vmem:[%s2 + $0x350] sm:$0xff]
    %v152 = vld [vmem:[%s2 + $0x358] sm:$0xff]
    %v153 = vld [vmem:[%s2 + $0x360] sm:$0xff]
    %v154 = vld [vmem:[%s2 + $0x368] sm:$0xff]
    %v155 = vld [vmem:[%s2 + $0x370] sm:$0xff]
    %v156 = vld [vmem:[%s2 + $0x378] sm:$0xff]
    %v157 = vld [vmem:[%s2 + $0x380] sm:$0xff]
    %v158 = vld [vmem:[%s2 + $0x388] sm:$0xff]
    %v159 = vld [vmem:[%s2 + $0x390] sm:$0xff]
    %v160 = vld [vmem:[%s2 + $0x398] sm:$0xff]
    %v161 = vld [vmem:[%s2 + $0x3a0] sm:$0xff]
    %v162 = vld [vmem:[%s2 + $0x3a8] sm:$0xff]
    %v163 = vld [vmem:[%s2 + $0x3b0] sm:$0xff]
    %v164 = vld [vmem:[%s2 + $0x3b8] sm:$0xff]
    %v165 = vld [vmem:[%s2 + $0x3c0] sm:$0xff]
    %v166 = vld [vmem:[%s2 + $0x3c8] sm:$0xff]
    %v167 = vld [vmem:[%s2 + $0x3d0] sm:$0xff]
    %v168 = vld [vmem:[%s2 + $0x3d8] sm:$0xff]
    %v169 = vld [vmem:[%s2 + $0x3e0] sm:$0xff]
    %v170 = vld [vmem:[%s2 + $0x3e8] sm:$0xff]
    %v171 = vld [vmem:[%s2 + $0x3f0] sm:$0xff]
    %v172 = vld [vmem:[%s2 + $0x3f8] sm:$0xff]
    %v173 = vld [vmem:[%s2 + $0x400] sm:$0xff]
    %v174 = vld [vmem:[%s2 + $0x408] sm:$0xff]
    %v175 = vld [vmem:[%s2 + $0x410] sm:$0xff]
    %v176 = vld [vmem:[%s2 + $0x418] sm:$0xff]
    %v177 = vld [vmem:[%s2 + $0x420] sm:$0xff]
    %v178 = vld [vmem:[%s2 + $0x428] sm:$0xff]
    %v179 = vld [vmem:[%s2 + $0x430] sm:$0xff]
    %v180 = vld [vmem:[%s2 + $0x438] sm:$0xff]
    %v181 = vld [vmem:[%s2 + $0x440] sm:$0xff]
    %v182 = vld [vmem:[%s2 + $0x448] sm:$0xff]
    %v183 = vld [vmem:[%s2 + $0x450] sm:$0xff]
    %v184 = vld [vmem:[%s2 + $0x458] sm:$0xff]
    %v185 = vld [vmem:[%s2 + $0x460] sm:$0xff]
    %v186 = vld [vmem:[%s2 + $0x468] sm:$0xff]
    %v187 = vld [vmem:[%s2 + $0x470] sm:$0xff]
    %v188 = vld [vmem:[%s2 + $0x478] sm:$0xff]
    %v189 = vld [vmem:[%s2 + $0x480] sm:$0xff]
    %v190 = vld [vmem:[%s2 + $0x488] sm:$0xff]
    %v191 = vld [vmem:[%s2 + $0x490] sm:$0xff]
    %v192 = vld [vmem:[%s2 + $0x498] sm:$0xff]
    %v193 = vld [vmem:[%s2 + $0x4a0] sm:$0xff]
    %v194 = vld [vmem:[%s2 + $0x4a8] sm:$0xff]
    %v195 = vld [vmem:[%s2 + $0x4b0] sm:$0xff]
    %v196 = vld [vmem:[%s2 + $0x4b8] sm:$0xff]
    %v197 = vld [vmem:[%s2 + $0x4c0] sm:$0xff]
    %v198 = vld [vmem:[%s2 + $0x4c8] sm:$0xff]
    %v199 = vld [vmem:[%s2 + $0x4d0] sm:$0xff]
    %v200 = vld [vmem:[%s2 + $0x4d8] sm:$0xff]
    %v201 = vld [vmem:[%s2 + $0x4e0] sm:$0xff]
    %v202 = vld [vmem:[%s2 + $0x4e8] sm:$0xff]
    %v203 = vld [vmem:[%s2 + $0x4f0] sm:$0xff]
    %v204 = vld [vmem:[%s2 + $0x4f8] sm:$0xff]
    %v205 = vld [vmem:[%s2 + $0x500] sm:$0xff]
    %v206 = vld [vmem:[%s2 + $0x508] sm:$0xff]
    %v207 = vld [vmem:[%s2 + $0x510] sm:$0xff]
    %v208 = vld [vmem:[%s2 + $0x518] sm:$0xff]
    %v209 = vld [vmem:[%s2 + $0x520] sm:$0xff]
    %v210 = vld [vmem:[%s2 + $0x528] sm:$0xff]
    %v211 = vld [vmem:[%s2 + $0x530] sm:$0xff]
    %v212 = vld [vmem:[%s2 + $0x538] sm:$0xff]
    %v213 = vld [vmem:[%s2 + $0x540] sm:$0xff]
    %v214 = vld [vmem:[%s2 + $0x548] sm:$0xff]
    %v215 = vld [vmem:[%s2 + $0x550] sm:$0xff]
    %v216 = vld [vmem:[%s2 + $0x558] sm:$0xff]
    %v217 = vld [vmem:[%s2 + $0x560] sm:$0xff]
    %v218 = vld [vmem:[%s2 + $0x568] sm:$0xff]
    %v219 = vld [vmem:[%s2 + $0x570] sm:$0xff]
    %v220 = vld [vmem:[%s2 + $0x578] sm:$0xff]
    %v221 = vld [vmem:[%s2 + $0x580] sm:$0xff]
    %v222 = vld [vmem:[%s2 + $0x588] sm:$0xff]
    %v223 = vld [vmem:[%s2 + $0x590] sm:$0xff]
    %v224 = vld [vmem:[%s2 + $0x598] sm:$0xff]
    %v225 = vld [vmem:[%s2 + $0x5a0] sm:$0xff]
    %v226 = vld [vmem:[%s2 + $0x5a8] sm:$0xff]
    %v227 = vld [vmem:[%s2 + $0x5b0] sm:$0xff]
    %v228 = vld [vmem:[%s2 + $0x5b8] sm:$0xff]
    %v229 = vld [vmem:[%s2 + $0x5c0] sm:$0xff]
    %v230 = vld [vmem:[%s2 + $0x5c8] sm:$0xff]
    %v231 = vld [vmem:[%s2 + $0x5d0] sm:$0xff]
    %v232 = vld [vmem:[%s2 + $0x5d8] sm:$0xff]
    %v233 = vld [vmem:[%s2 + $0x5e0] sm:$0xff]
    %v234 = vld [vmem:[%s2 + $0x5e8] sm:$0xff]
    %v235 = vld [vmem:[%s2 + $0x5f0] sm:$0xff]
    %v236 = vld [vmem:[%s2 + $0x5f8] sm:$0xff]
    %v237 = vld [vmem:[%s2 + $0x600] sm:$0xff]
    %v238 = vld [vmem:[%s2 + $0x608] sm:$0xff]
    %v239 = vld [vmem:[%s2 + $0x610] sm:$0xff]
    %v240 = vld [vmem:[%s2 + $0x618] sm:$0xff]
    %v241 = vld [vmem:[%s2 + $0x620] sm:$0xff]
    %v242 = vld [vmem:[%s2 + $0x628] sm:$0xff]
    %v243 = vld [vmem:[%s2 + $0x630] sm:$0xff]
    %v244 = vld [vmem:[%s2 + $0x638] sm:$0xff]
    %v245 = vld [vmem:[%s2 + $0x640] sm:$0xff]
    %v246 = vld [vmem:[%s2 + $0x648] sm:$0xff]
    %v247 = vld [vmem:[%s2 + $0x650] sm:$0xff]
    %v248 = vld [vmem:[%s2 + $0x658] sm:$0xff]
    %v249 = vld [vmem:[%s2 + $0x660] sm:$0xff]
    %v250 = vld [vmem:[%s2 + $0x668] sm:$0xff]
    %v251 = vld [vmem:[%s2 + $0x670] sm:$0xff]
    %v252 = vld [vmem:[%s2 + $0x678] sm:$0xff]
    %v253 = vld [vmem:[%s2 + $0x680] sm:$0xff]
    %v254 = vld [vmem:[%s2 + $0x688] sm:$0xff]
    %v255 = vld [vmem:[%s2 + $0x690] sm:$0xff]
    %v256 = vld [vmem:[%s2 + $0x698] sm:$0xff]
    %v257 = vld [vmem:[%s2 + $0x6a0] sm:$0xff]
    %v258 = vld [vmem:[%s2 + $0x6a8] sm:$0xff]
    %v259 = vld [vmem:[%s2 + $0x6b0] sm:$0xff]
    %v260 = vld [vmem:[%s2 + $0x6b8] sm:$0xff]
    %v261 = vld [vmem:[%s2 + $0x6c0] sm:$0xff]
    %v262 = vld [vmem:[%s2 + $0x6c8] sm:$0xff]
    %v263 = vld [vmem:[%s2 + $0x6d0] sm:$0xff]
    %v264 = vld [vmem:[%s2 + $0x6d8] sm:$0xff]
    %v265 = vld [vmem:[%s2 + $0x6e0] sm:$0xff]
    %v266 = vld [vmem:[%s2 + $0x6e8] sm:$0xff]
    %v267 = vld [vmem:[%s2 + $0x6f0] sm:$0xff]
    %v268 = vld [vmem:[%s2 + $0x6f8] sm:$0xff]
    %v269 = vld [vmem:[%s2 + $0x700] sm:$0xff]
    %v270 = vld [vmem:[%s2 + $0x708] sm:$0xff]
    %v271 = vld [vmem:[%s2 + $0x710] sm:$0xff]
    %v272 = vld [vmem:[%s2 + $0x718] sm:$0xff]
    %v273 = vld [vmem:[%s2 + $0x720] sm:$0xff]
    %v274 = vld [vmem:[%s2 + $0x728] sm:$0xff]
    %v275 = vld [vmem:[%s2 + $0x730] sm:$0xff]
    %v276 = vld [vmem:[%s2 + $0x738] sm:$0xff]
    %v277 = vld [vmem:[%s2 + $0x740] sm:$0xff]
    %v278 = vld [vmem:[%s2 + $0x748] sm:$0xff]
    %v279 = vld [vmem:[%s2 + $0x750] sm:$0xff]
    %v280 = vld [vmem:[%s2 + $0x758] sm:$0xff]
    %v281 = vld [vmem:[%s2 + $0x760] sm:$0xff]
    %v282 = vld [vmem:[%s2 + $0x768] sm:$0xff]
    %v283 = vld [vmem:[%s2 + $0x770] sm:$0xff]
    %v284 = vld [vmem:[%s2 + $0x778] sm:$0xff]
    %v285 = vld [vmem:[%s2 + $0x780] sm:$0xff]
    %v286 = vld [vmem:[%s2 + $0x788] sm:$0xff]
    %v287 = vld [vmem:[%s2 + $0x790] sm:$0xff]
    %v288 = vld [vmem:[%s2 + $0x798] sm:$0xff]
    %v289 = vld [vmem:[%s2 + $0x7a0] sm:$0xff]
    %v290 = vld [vmem:[%s2 + $0x7a8] sm:$0xff]
    %v291 = vld [vmem:[%s2 + $0x7b0] sm:$0xff]
    %v292 = vld [vmem:[%s2 + $0x7b8] sm:$0xff]
    %v293 = vld [vmem:[%s2 + $0x7c0] sm:$0xff]
    %v294 = vld [vmem:[%s2 + $0x7c8] sm:$0xff]
    %v295 = vld [vmem:[%s2 + $0x7d0] sm:$0xff]
    %v296 = vld [vmem:[%s2 + $0x7d8] sm:$0xff]
    %v297 = vld [vmem:[%s2 + $0x7e0] sm:$0xff]
    %v298 = vld [vmem:[%s2 + $0x7e8] sm:$0xff]
    %v299 = vld [vmem:[%s2 + $0x7f0] sm:$0xff]
    %v300 = vld [vmem:[%s2 + $0x7f8] sm:$0xff]
    %v301 = vld [vmem:[%s2 + $0x800] sm:$0xff]
    %v302 = vld [vmem:[%s2 + $0x808] sm:$0xff]
    %v303 = vld [vmem:[%s2 + $0x810] sm:$0xff]
    %v304 = vld [vmem:[%s2 + $0x818] sm:$0xff]
    %v305 = vld [vmem:[%s2 + $0x820] sm:$0xff]
    %v306 = vld [vmem:[%s2 + $0x828] sm:$0xff]
    %v307 = vld [vmem:[%s2 + $0x830] sm:$0xff]
    %v308 = vld [vmem:[%s2 + $0x838] sm:$0xff]
    %v309 = vld [vmem:[%s2 + $0x840] sm:$0xff]
    %v310 = vld [vmem:[%s2 + $0x848] sm:$0xff]
    %v311 = vld [vmem:[%s2 + $0x850] sm:$0xff]
    %v312 = vld [vmem:[%s2 + $0x858] sm:$0xff]
    %v313 = vld [vmem:[%s2 + $0x860] sm:$0xff]
    %v314 = vld [vmem:[%s2 + $0x868] sm:$0xff]
    %v315 = vld [vmem:[%s2 + $0x870] sm:$0xff]
    %v316 = vld [vmem:[%s2 + $0x878] sm:$0xff]
    %v317 = vld [vmem:[%s2 + $0x880] sm:$0xff]
    %v318 = vld [vmem:[%s2 + $0x888] sm:$0xff]
    %v319 = vld [vmem:[%s2 + $0x890] sm:$0xff]
    %v320 = vld [vmem:[%s2 + $0x898] sm:$0xff]
    %v321 = vld [vmem:[%s2 + $0x8a0] sm:$0xff]
    %v322 = vld [vmem:[%s2 + $0x8a8] sm:$0xff]
    %v323 = vld [vmem:[%s2 + $0x8b0] sm:$0xff]
    %v324 = vld [vmem:[%s2 + $0x8b8] sm:$0xff]
    %v325 = vld [vmem:[%s2 + $0x8c0] sm:$0xff]
    %v326 = vld [vmem:[%s2 + $0x8c8] sm:$0xff]
    %v327 = vld [vmem:[%s2 + $0x8d0] sm:$0xff]
    %v328 = vld [vmem:[%s2 + $0x8d8] sm:$0xff]
    %v329 = vld [vmem:[%s2 + $0x8e0] sm:$0xff]
    %v330 = vld [vmem:[%s2 + $0x8e8] sm:$0xff]
    %v331 = vld [vmem:[%s2 + $0x8f0] sm:$0xff]
    %v332 = vld [vmem:[%s2 + $0x8f8] sm:$0xff]
    %v333 = vld [vmem:[%s2 + $0x900] sm:$0xff]
    %v334 = vld [vmem:[%s2 + $0x908] sm:$0xff]
    %v335 = vld [vmem:[%s2 + $0x910] sm:$0xff]
    %v336 = vld [vmem:[%s2 + $0x918] sm:$0xff]
    %v337 = vld [vmem:[%s2 + $0x920] sm:$0xff]
    %v338 = vld [vmem:[%s2 + $0x928] sm:$0xff]
    %v339 = vld [vmem:[%s2 + $0x930] sm:$0xff]
    %v340 = vld [vmem:[%s2 + $0x938] sm:$0xff]
    %v341 = vld [vmem:[%s2 + $0x940] sm:$0xff]
    %v342 = vld [vmem:[%s2 + $0x948] sm:$0xff]
    %v343 = vld [vmem:[%s2 + $0x950] sm:$0xff]
    %v344 = vld [vmem:[%s2 + $0x958] sm:$0xff]
    %v345 = vld [vmem:[%s2 + $0x960] sm:$0xff]
    %v346 = vld [vmem:[%s2 + $0x968] sm:$0xff]
    %v347 = vld [vmem:[%s2 + $0x970] sm:$0xff]
    %v348 = vld [vmem:[%s2 + $0x978] sm:$0xff]
    %v349 = vld [vmem:[%s2 + $0x980] sm:$0xff]
    %v350 = vld [vmem:[%s2 + $0x988] sm:$0xff]
    %v351 = vld [vmem:[%s2 + $0x990] sm:$0xff]
    %v352 = vld [vmem:[%s2 + $0x998] sm:$0xff]
    %v353 = vld [vmem:[%s2 + $0x9a0] sm:$0xff]
    %v354 = vld [vmem:[%s2 + $0x9a8] sm:$0xff]
    %v355 = vld [vmem:[%s2 + $0x9b0] sm:$0xff]
    %v356 = vld [vmem:[%s2 + $0x9b8] sm:$0xff]
    %v357 = vld [vmem:[%s2 + $0x9c0] sm:$0xff]
    %v358 = vld [vmem:[%s2 + $0x9c8] sm:$0xff]
    %v359 = vld [vmem:[%s2 + $0x9d0] sm:$0xff]
    %v360 = vld [vmem:[%s2 + $0x9d8] sm:$0xff]
    %v361 = vld [vmem:[%s2 + $0x9e0] sm:$0xff]
    %v362 = vld [vmem:[%s2 + $0x9e8] sm:$0xff]
    %v363 = vld [vmem:[%s2 + $0x9f0] sm:$0xff]
    %v364 = vld [vmem:[%s2 + $0x9f8] sm:$0xff]
    %v365 = vld [vmem:[%s2 + $0xa00] sm:$0xff]
    %v366 = vld [vmem:[%s2 + $0xa08] sm:$0xff]
    %v367 = vld [vmem:[%s2 + $0xa10] sm:$0xff]
    %v368 = vld [vmem:[%s2 + $0xa18] sm:$0xff]
    %v369 = vld [vmem:[%s2 + $0xa20] sm:$0xff]
    %v370 = vld [vmem:[%s2 + $0xa28] sm:$0xff]
    %v371 = vld [vmem:[%s2 + $0xa30] sm:$0xff]
    %v372 = vld [vmem:[%s2 + $0xa38] sm:$0xff]
    %v373 = vld [vmem:[%s2 + $0xa40] sm:$0xff]
    %v374 = vld [vmem:[%s2 + $0xa48] sm:$0xff]
    %v375 = vld [vmem:[%s2 + $0xa50] sm:$0xff]
    %v376 = vld [vmem:[%s2 + $0xa58] sm:$0xff]
    %v377 = vld [vmem:[%s2 + $0xa60] sm:$0xff]
    %v378 = vld [vmem:[%s2 + $0xa68] sm:$0xff]
    %v379 = vld [vmem:[%s2 + $0xa70] sm:$0xff]
    %v380 = vld [vmem:[%s2 + $0xa78] sm:$0xff]
    %v381 = vld [vmem:[%s2 + $0xa80] sm:$0xff]
    %v382 = vld [vmem:[%s2 + $0xa88] sm:$0xff]
    %v383 = vld [vmem:[%s2 + $0xa90] sm:$0xff]
    %v384 = vld [vmem:[%s2 + $0xa98] sm:$0xff]
    %v385 = vld [vmem:[%s2 + $0xaa0] sm:$0xff]
    %v386 = vld [vmem:[%s2 + $0xaa8] sm:$0xff]
    %v387 = vld [vmem:[%s2 + $0xab0] sm:$0xff]
    %v388 = vld [vmem:[%s2 + $0xab8] sm:$0xff]
    %v389 = vld [vmem:[%s2 + $0xac0] sm:$0xff]
    %v390 = vld [vmem:[%s2 + $0xac8] sm:$0xff]
    %v391 = vld [vmem:[%s2 + $0xad0] sm:$0xff]
    %v392 = vld [vmem:[%s2 + $0xad8] sm:$0xff]
    %v393 = vld [vmem:[%s2 + $0xae0] sm:$0xff]
    %v394 = vld [vmem:[%s2 + $0xae8] sm:$0xff]
    %v395 = vld [vmem:[%s2 + $0xaf0] sm:$0xff]
    %v396 = vld [vmem:[%s2 + $0xaf8] sm:$0xff]
    %v397 = vld [vmem:[%s2 + $0xb00] sm:$0xff]
    %v398 = vld [vmem:[%s2 + $0xb08] sm:$0xff]
    %v399 = vld [vmem:[%s2 + $0xb10] sm:$0xff]
    %v400 = vld [vmem:[%s2 + $0xb18] sm:$0xff]
    %v401 = vld [vmem:[%s2 + $0xb20] sm:$0xff]
    %v402 = vld [vmem:[%s2 + $0xb28] sm:$0xff]
    %v403 = vld [vmem:[%s2 + $0xb30] sm:$0xff]
    %v404 = vld [vmem:[%s2 + $0xb38] sm:$0xff]
    %v405 = vld [vmem:[%s2 + $0xb40] sm:$0xff]
    %v406 = vld [vmem:[%s2 + $0xb48] sm:$0xff]
    %v407 = vld [vmem:[%s2 + $0xb50] sm:$0xff]
    %v408 = vld [vmem:[%s2 + $0xb58] sm:$0xff]
    %v409 = vld [vmem:[%s2 + $0xb60] sm:$0xff]
    %v410 = vld [vmem:[%s2 + $0xb68] sm:$0xff]
    %v411 = vld [vmem:[%s2 + $0xb70] sm:$0xff]
    %v412 = vld [vmem:[%s2 + $0xb78] sm:$0xff]
    %v413 = vld [vmem:[%s2 + $0xb80] sm:$0xff]
    %v414 = vld [vmem:[%s2 + $0xb88] sm:$0xff]
    %v415 = vld [vmem:[%s2 + $0xb90] sm:$0xff]
    %v416 = vld [vmem:[%s2 + $0xb98] sm:$0xff]
    %v417 = vld [vmem:[%s2 + $0xba0] sm:$0xff]
    %v418 = vld [vmem:[%s2 + $0xba8] sm:$0xff]
    %v419 = vld [vmem:[%s2 + $0xbb0] sm:$0xff]
    %v420 = vld [vmem:[%s2 + $0xbb8] sm:$0xff]
    %v421 = vld [vmem:[%s2 + $0xbc0] sm:$0xff]
    %v422 = vld [vmem:[%s2 + $0xbc8] sm:$0xff]
    %v423 = vld [vmem:[%s2 + $0xbd0] sm:$0xff]
    %v424 = vld [vmem:[%s2 + $0xbd8] sm:$0xff]
    %v425 = vld [vmem:[%s2 + $0xbe0] sm:$0xff]
    %v426 = vld [vmem:[%s2 + $0xbe8] sm:$0xff]
    %v427 = vld [vmem:[%s2 + $0xbf0] sm:$0xff]
    %v428 = vld [vmem:[%s2 + $0xbf8] sm:$0xff]
    %v429 = vld [vmem:[%s2 + $0xc00] sm:$0xff]
    %v430 = vld [vmem:[%s2 + $0xc08] sm:$0xff]
    %v431 = vld [vmem:[%s2 + $0xc10] sm:$0xff]
    %v432 = vld [vmem:[%s2 + $0xc18] sm:$0xff]
    %v433 = vld [vmem:[%s2 + $0xc20] sm:$0xff]
    %v434 = vld [vmem:[%s2 + $0xc28] sm:$0xff]
    %v435 = vld [vmem:[%s2 + $0xc30] sm:$0xff]
    %v436 = vld [vmem:[%s2 + $0xc38] sm:$0xff]
    %v437 = vld [vmem:[%s3] sm:$0xf]
    %v439 = vlaneseq
    %v440 = vshrl.u32 %v439, 7
    %v441 = vsub.s32 0, %v440
    %v442 = vrot.slane %v437, %v441
    %v443 = vlaneseq
    %v444 = vshrl.u32 %v443, 7
    %v445 = vsub.s32 1, %v444
    %v446 = vrot.slane %v437, %v445
    %v447 = vlaneseq
    %v448 = vshrl.u32 %v447, 7
    %v449 = vsub.s32 2, %v448
    %v450 = vrot.slane %v437, %v449
    %v451 = vlaneseq
    %v452 = vshrl.u32 %v451, 7
    %v453 = vsub.s32 3, %v452
    %v454 = vrot.slane %v437, %v453
    %vm459 = vcmask 130048
    %v461 = vsel %vm459, %v44, 0
    %463 = vmatprep.subr.mxu0 %v46
    %464 = vmatpush1.msra.mxu0 %v45
    %465 = vmatprep.subr.mxu0 %v50
    %466 = vmatpush1.msra.mxu0 %v49
    %467 = vmatprep.subr.mxu0 %v54
    %468 = vmatpush1.msra.mxu0 %v53
    %469 = vmatprep.subr.mxu0 %v58
    %470 = vmatpush1.msra.mxu0 %v57
    %471 = vmatprep.subr.mxu0 %v62
    %472 = vmatpush1.msra.mxu0 %v61
    %473 = vmatprep.subr.mxu0 %v66
    %474 = vmatpush1.msra.mxu0 %v65
    %475 = vmatprep.subr.mxu0 %v70
    %476 = vmatpush1.msra.mxu0 %v69
    %477 = vmatprep.subr.mxu0 %v74
    %478 = vmatpush1.msra.mxu0 %v73
    %479 = vmatprep.subr.mxu0 %v78
    %480 = vmatpush1.msra.mxu0 %v77
    %481 = vmatprep.subr.mxu0 %v82
    %482 = vmatpush1.msra.mxu0 %v81
    %483 = vmatprep.subr.mxu0 %v86
    %484 = vmatpush1.msra.mxu0 %v85
    %485 = vmatprep.subr.mxu0 %v90
    %486 = vmatpush1.msra.mxu0 %v89
    %487 = vmatprep.subr.mxu0 %v94
    %488 = vmatpush1.msra.mxu0 %v93
    %489 = vmatprep.subr.mxu0 %v98
    %490 = vmatpush1.msra.mxu0 %v97
    %491 = vmatprep.subr.mxu0 %v102
    %492 = vmatpush1.msra.mxu0 %v101
    %493 = vmatprep.subr.mxu0 %v106
    %494 = vmatpush1.msra.mxu0 %v105
    %495 = vmatprep.subr.mxu0 %v110
    %496 = vmatpush1.msra.mxu0 %v109
    %497 = vmatprep.subr.mxu0 %v114
    %498 = vmatpush1.msra.mxu0 %v113
    %499 = vmatprep.subr.mxu0 %v118
    %500 = vmatpush1.msra.mxu0 %v117
    %501 = vmatprep.subr.mxu0 %v122
    %502 = vmatpush1.msra.mxu0 %v121
    %503 = vmatprep.subr.mxu0 %v126
    %504 = vmatpush1.msra.mxu0 %v125
    %505 = vmatprep.subr.mxu0 %v130
    %506 = vmatpush1.msra.mxu0 %v129
    %507 = vmatprep.subr.mxu0 %v134
    %508 = vmatpush1.msra.mxu0 %v133
    %509 = vmatprep.subr.mxu0 %v138
    %510 = vmatpush1.msra.mxu0 %v137
    %511 = vmatprep.subr.mxu0 %v142
    %512 = vmatpush1.msra.mxu0 %v141
    %513 = vmatprep.subr.mxu0 %v146
    %514 = vmatpush1.msra.mxu0 %v145
    %515 = vmatprep.subr.mxu0 %v150
    %516 = vmatpush1.msra.mxu0 %v149
    %517 = vmatprep.subr.mxu0 %v154
    %518 = vmatpush1.msra.mxu0 %v153
    %519 = vmatprep.subr.mxu0 %v158
    %520 = vmatpush1.msra.mxu0 %v157
    %521 = vmatprep.subr.mxu0 %v162
    %522 = vmatpush1.msra.mxu0 %v161
    %523 = vmatprep.subr.mxu0 %v166
    %524 = vmatpush1.msra.mxu0 %v165
    %525 = vmatprep.subr.mxu0 %v170
    %526 = vmatpush1.msra.mxu0 %v169
    %527 = vmatprep.mubr.f32.mxu0 %v39
    %528 = vmatmul.mubr.f32.gmra.mrb[0].mxu0 %v38
    %v529 = vpop.f32.mrb[0].mxu0
    %v530 = vadd.f32 %v442, %v529
    %v531 = vpop.f32.mrb[0].mxu0
    %v532 = vadd.f32 %v446, %v531
    %533 = vdwg.mxu0
    %534 = vmatprep.subr.mxu0 %v174
    %535 = vmatpush1.msra.mxu0 %v173
    %536 = vmatprep.subr.mxu0 %v178
    %537 = vmatpush1.msra.mxu0 %v177
    %538 = vmatprep.subr.mxu0 %v182
    %539 = vmatpush1.msra.mxu0 %v181
    %540 = vmatprep.subr.mxu0 %v186
    %541 = vmatpush1.msra.mxu0 %v185
    %542 = vmatprep.subr.mxu0 %v190
    %543 = vmatpush1.msra.mxu0 %v189
    %544 = vmatprep.subr.mxu0 %v194
    %545 = vmatpush1.msra.mxu0 %v193
    %546 = vmatprep.subr.mxu0 %v198
    %547 = vmatpush1.msra.mxu0 %v197
    %548 = vmatprep.subr.mxu0 %v202
    %549 = vmatpush1.msra.mxu0 %v201
    %550 = vmatprep.subr.mxu0 %v206
    %551 = vmatpush1.msra.mxu0 %v205
    %552 = vmatprep.subr.mxu0 %v210
    %553 = vmatpush1.msra.mxu0 %v209
    %554 = vmatprep.subr.mxu0 %v214
    %555 = vmatpush1.msra.mxu0 %v213
    %556 = vmatprep.subr.mxu0 %v218
    %557 = vmatpush1.msra.mxu0 %v217
    %558 = vmatprep.subr.mxu0 %v222
    %559 = vmatpush1.msra.mxu0 %v221
    %560 = vmatprep.subr.mxu0 %v226
    %561 = vmatpush1.msra.mxu0 %v225
    %562 = vmatprep.subr.mxu0 %v230
    %563 = vmatpush1.msra.mxu0 %v229
    %564 = vmatprep.subr.mxu0 %v234
    %565 = vmatpush1.msra.mxu0 %v233
    %566 = vmatprep.subr.mxu0 %v238
    %567 = vmatpush1.msra.mxu0 %v237
    %568 = vmatprep.subr.mxu0 %v242
    %569 = vmatpush1.msra.mxu0 %v241
    %570 = vmatprep.subr.mxu0 %v246
    %571 = vmatpush1.msra.mxu0 %v245
    %572 = vmatprep.subr.mxu0 %v250
    %573 = vmatpush1.msra.mxu0 %v249
    %574 = vmatprep.subr.mxu0 %v254
    %575 = vmatpush1.msra.mxu0 %v253
    %576 = vmatprep.subr.mxu0 %v258
    %577 = vmatpush1.msra.mxu0 %v257
    %578 = vmatprep.subr.mxu0 %v262
    %579 = vmatpush1.msra.mxu0 %v261
    %580 = vmatprep.subr.mxu0 %v266
    %581 = vmatpush1.msra.mxu0 %v265
    %582 = vmatprep.subr.mxu0 %v270
    %583 = vmatpush1.msra.mxu0 %v269
    %584 = vmatprep.subr.mxu0 %v274
    %585 = vmatpush1.msra.mxu0 %v273
    %586 = vmatprep.subr.mxu0 %v278
    %587 = vmatpush1.msra.mxu0 %v277
    %588 = vmatprep.subr.mxu0 %v282
    %589 = vmatpush1.msra.mxu0 %v281
    %590 = vmatprep.subr.mxu0 %v286
    %591 = vmatpush1.msra.mxu0 %v285
    %592 = vmatprep.subr.mxu0 %v290
    %593 = vmatpush1.msra.mxu0 %v289
    %594 = vmatprep.subr.mxu0 %v294
    %595 = vmatpush1.msra.mxu0 %v293
    %596 = vmatprep.subr.mxu0 %v298
    %597 = vmatpush1.msra.mxu0 %v297
    %598 = vmatprep.mubr.f32.mxu0 %v41
    %599 = vmatmul.mubr.f32.gmra.mrb[0].mxu0 %v40
    %v600 = vpop.f32.mrb[0].mxu0
    %v601 = vadd.f32 %v530, %v600
    %v602 = vpop.f32.mrb[0].mxu0
    %v603 = vadd.f32 %v532, %v602
    %604 = vdwg.mxu0
    %605 = vmatprep.subr.mxu0 %v302
    %606 = vmatpush1.msra.mxu0 %v301
    %607 = vmatprep.subr.mxu0 %v306
    %608 = vmatpush1.msra.mxu0 %v305
    %609 = vmatprep.subr.mxu0 %v310
    %610 = vmatpush1.msra.mxu0 %v309
    %611 = vmatprep.subr.mxu0 %v314
    %612 = vmatpush1.msra.mxu0 %v313
    %613 = vmatprep.subr.mxu0 %v318
    %614 = vmatpush1.msra.mxu0 %v317
    %615 = vmatprep.subr.mxu0 %v322
    %616 = vmatpush1.msra.mxu0 %v321
    %617 = vmatprep.subr.mxu0 %v326
    %618 = vmatpush1.msra.mxu0 %v325
    %619 = vmatprep.subr.mxu0 %v330
    %620 = vmatpush1.msra.mxu0 %v329
    %621 = vmatprep.subr.mxu0 %v334
    %622 = vmatpush1.msra.mxu0 %v333
    %623 = vmatprep.subr.mxu0 %v338
    %624 = vmatpush1.msra.mxu0 %v337
    %625 = vmatprep.subr.mxu0 %v342
    %626 = vmatpush1.msra.mxu0 %v341
    %627 = vmatprep.subr.mxu0 %v346
    %628 = vmatpush1.msra.mxu0 %v345
    %629 = vmatprep.subr.mxu0 %v350
    %630 = vmatpush1.msra.mxu0 %v349
    %631 = vmatprep.subr.mxu0 %v354
    %632 = vmatpush1.msra.mxu0 %v353
    %633 = vmatprep.subr.mxu0 %v358
    %634 = vmatpush1.msra.mxu0 %v357
    %635 = vmatprep.subr.mxu0 %v362
    %636 = vmatpush1.msra.mxu0 %v361
    %637 = vmatprep.subr.mxu0 %v366
    %638 = vmatpush1.msra.mxu0 %v365
    %639 = vmatprep.subr.mxu0 %v370
    %640 = vmatpush1.msra.mxu0 %v369
    %641 = vmatprep.subr.mxu0 %v374
    %642 = vmatpush1.msra.mxu0 %v373
    %643 = vmatprep.subr.mxu0 %v378
    %644 = vmatpush1.msra.mxu0 %v377
    %645 = vmatprep.subr.mxu0 %v382
    %646 = vmatpush1.msra.mxu0 %v381
    %647 = vmatprep.subr.mxu0 %v386
    %648 = vmatpush1.msra.mxu0 %v385
    %649 = vmatprep.subr.mxu0 %v390
    %650 = vmatpush1.msra.mxu0 %v389
    %651 = vmatprep.subr.mxu0 %v394
    %652 = vmatpush1.msra.mxu0 %v393
    %653 = vmatprep.subr.mxu0 %v398
    %654 = vmatpush1.msra.mxu0 %v397
    %655 = vmatprep.subr.mxu0 %v402
    %656 = vmatpush1.msra.mxu0 %v401
    %657 = vmatprep.subr.mxu0 %v406
    %658 = vmatpush1.msra.mxu0 %v405
    %659 = vmatprep.subr.mxu0 %v410
    %660 = vmatpush1.msra.mxu0 %v409
    %661 = vmatprep.subr.mxu0 %v414
    %662 = vmatpush1.msra.mxu0 %v413
    %663 = vmatprep.subr.mxu0 %v418
    %664 = vmatpush1.msra.mxu0 %v417
    %665 = vmatprep.subr.mxu0 %v422
    %666 = vmatpush1.msra.mxu0 %v421
    %667 = vmatprep.subr.mxu0 %v426
    %668 = vmatpush1.msra.mxu0 %v425
    %669 = vmatprep.mubr.f32.mxu0 %v43
    %670 = vmatmul.mubr.f32.gmra.mrb[0].mxu0 %v42
    %v671 = vpop.f32.mrb[0].mxu0
    %v672 = vadd.f32 %v601, %v671
    %v673 = vpop.f32.mrb[0].mxu0
    %v674 = vadd.f32 %v603, %v673
    %675 = vdwg.mxu0
    %676 = vmatprep.subr.mxu0 %v430
    %677 = vmatpush1.msra.mxu0 %v429
    %678 = vmatprep.subr.mxu0 %v434
    %679 = vmatpush1.msra.mxu0 %v433
    %680 = vmatprep.subr.mxu0 0.0
    %681 = vmatpush1.msra.mxu0 0.0
    %682 = vmatprep.subr.mxu0 0.0
    %683 = vmatpush1.msra.mxu0 0.0
    %684 = vmatprep.subr.mxu0 0.0
    %685 = vmatpush1.msra.mxu0 0.0
    %686 = vmatprep.subr.mxu0 0.0
    %687 = vmatpush1.msra.mxu0 0.0
    %688 = vmatprep.subr.mxu0 0.0
    %689 = vmatpush1.msra.mxu0 0.0
    %690 = vmatprep.subr.mxu0 0.0
    %691 = vmatpush1.msra.mxu0 0.0
    %692 = vmatprep.subr.mxu0 0.0
    %693 = vmatpush1.msra.mxu0 0.0
    %694 = vmatprep.subr.mxu0 0.0
    %695 = vmatpush1.msra.mxu0 0.0
    %696 = vmatprep.subr.mxu0 0.0
    %697 = vmatpush1.msra.mxu0 0.0
    %698 = vmatprep.subr.mxu0 0.0
    %699 = vmatpush1.msra.mxu0 0.0
    %700 = vmatprep.subr.mxu0 0.0
    %701 = vmatpush1.msra.mxu0 0.0
    %702 = vmatprep.subr.mxu0 0.0
    %703 = vmatpush1.msra.mxu0 0.0
    %704 = vmatprep.subr.mxu0 0.0
    %705 = vmatpush1.msra.mxu0 0.0
    %706 = vmatprep.subr.mxu0 0.0
    %707 = vmatpush1.msra.mxu0 0.0
    %708 = vmatprep.subr.mxu0 0.0
    %709 = vmatpush1.msra.mxu0 0.0
    %710 = vmatprep.subr.mxu0 0.0
    %711 = vmatpush1.msra.mxu0 0.0
    %712 = vmatprep.subr.mxu0 0.0
    %713 = vmatpush1.msra.mxu0 0.0
    %714 = vmatprep.subr.mxu0 0.0
    %715 = vmatpush1.msra.mxu0 0.0
    %716 = vmatprep.subr.mxu0 0.0
    %717 = vmatpush1.msra.mxu0 0.0
    %718 = vmatprep.subr.mxu0 0.0
    %719 = vmatpush1.msra.mxu0 0.0
    %720 = vmatprep.subr.mxu0 0.0
    %721 = vmatpush1.msra.mxu0 0.0
    %722 = vmatprep.subr.mxu0 0.0
    %723 = vmatpush1.msra.mxu0 0.0
    %724 = vmatprep.subr.mxu0 0.0
    %725 = vmatpush1.msra.mxu0 0.0
    %726 = vmatprep.subr.mxu0 0.0
    %727 = vmatpush1.msra.mxu0 0.0
    %728 = vmatprep.subr.mxu0 0.0
    %729 = vmatpush1.msra.mxu0 0.0
    %730 = vmatprep.subr.mxu0 0.0
    %731 = vmatpush1.msra.mxu0 0.0
    %732 = vmatprep.subr.mxu0 0.0
    %733 = vmatpush1.msra.mxu0 0.0
    %734 = vmatprep.subr.mxu0 0.0
    %735 = vmatpush1.msra.mxu0 0.0
    %736 = vmatprep.subr.mxu0 0.0
    %737 = vmatpush1.msra.mxu0 0.0
    %738 = vmatprep.subr.mxu0 0.0
    %739 = vmatpush1.msra.mxu0 0.0
    %740 = vmatprep.mubr.f32.mxu0 0.0
    %741 = vmatmul.mubr.f32.gmra.mrb[0].mxu0 %v461
    %v742 = vpop.f32.mrb[0].mxu0
    %v743 = vadd.f32 %v672, %v742
    %v744 = vpop.f32.mrb[0].mxu0
    %v745 = vadd.f32 %v674, %v744
    %746 = vdwg.mxu0
    %747 = vmatprep.subr.mxu0 %v48
    %748 = vmatpush1.msra.mxu0 %v47
    %749 = vmatprep.subr.mxu0 %v52
    %750 = vmatpush1.msra.mxu0 %v51
    %751 = vmatprep.subr.mxu0 %v56
    %752 = vmatpush1.msra.mxu0 %v55
    %753 = vmatprep.subr.mxu0 %v60
    %754 = vmatpush1.msra.mxu0 %v59
    %755 = vmatprep.subr.mxu0 %v64
    %756 = vmatpush1.msra.mxu0 %v63
    %757 = vmatprep.subr.mxu0 %v68
    %758 = vmatpush1.msra.mxu0 %v67
    %759 = vmatprep.subr.mxu0 %v72
    %760 = vmatpush1.msra.mxu0 %v71
    %761 = vmatprep.subr.mxu0 %v76
    %762 = vmatpush1.msra.mxu0 %v75
    %763 = vmatprep.subr.mxu0 %v80
    %764 = vmatpush1.msra.mxu0 %v79
    %765 = vmatprep.subr.mxu0 %v84
    %766 = vmatpush1.msra.mxu0 %v83
    %767 = vmatprep.subr.mxu0 %v88
    %768 = vmatpush1.msra.mxu0 %v87
    %769 = vmatprep.subr.mxu0 %v92
    %770 = vmatpush1.msra.mxu0 %v91
    %771 = vmatprep.subr.mxu0 %v96
    %772 = vmatpush1.msra.mxu0 %v95
    %773 = vmatprep.subr.mxu0 %v100
    %774 = vmatpush1.msra.mxu0 %v99
    %775 = vmatprep.subr.mxu0 %v104
    %776 = vmatpush1.msra.mxu0 %v103
    %777 = vmatprep.subr.mxu0 %v108
    %778 = vmatpush1.msra.mxu0 %v107
    %779 = vmatprep.subr.mxu0 %v112
    %780 = vmatpush1.msra.mxu0 %v111
    %781 = vmatprep.subr.mxu0 %v116
    %782 = vmatpush1.msra.mxu0 %v115
    %783 = vmatprep.subr.mxu0 %v120
    %784 = vmatpush1.msra.mxu0 %v119
    %785 = vmatprep.subr.mxu0 %v124
    %786 = vmatpush1.msra.mxu0 %v123
    %787 = vmatprep.subr.mxu0 %v128
    %788 = vmatpush1.msra.mxu0 %v127
    %789 = vmatprep.subr.mxu0 %v132
    %790 = vmatpush1.msra.mxu0 %v131
    %791 = vmatprep.subr.mxu0 %v136
    %792 = vmatpush1.msra.mxu0 %v135
    %793 = vmatprep.subr.mxu0 %v140
    %794 = vmatpush1.msra.mxu0 %v139
    %795 = vmatprep.subr.mxu0 %v144
    %796 = vmatpush1.msra.mxu0 %v143
    %797 = vmatprep.subr.mxu0 %v148
    %798 = vmatpush1.msra.mxu0 %v147
    %799 = vmatprep.subr.mxu0 %v152
    %800 = vmatpush1.msra.mxu0 %v151
    %801 = vmatprep.subr.mxu0 %v156
    %802 = vmatpush1.msra.mxu0 %v155
    %803 = vmatprep.subr.mxu0 %v160
    %804 = vmatpush1.msra.mxu0 %v159
    %805 = vmatprep.subr.mxu0 %v164
    %806 = vmatpush1.msra.mxu0 %v163
    %807 = vmatprep.subr.mxu0 %v168
    %808 = vmatpush1.msra.mxu0 %v167
    %809 = vmatprep.subr.mxu0 %v172
    %810 = vmatpush1.msra.mxu0 %v171
    %811 = vmatprep.mubr.f32.mxu0 %v39
    %812 = vmatmul.mubr.f32.gmra.mrb[0].mxu0 %v38
    %v813 = vpop.f32.mrb[0].mxu0
    %v814 = vadd.f32 %v450, %v813
    %v815 = vpop.f32.mrb[0].mxu0
    %v816 = vadd.f32 %v454, %v815
    %817 = vdwg.mxu0
    %818 = vmatprep.subr.mxu0 %v176
    %819 = vmatpush1.msra.mxu0 %v175
    %820 = vmatprep.subr.mxu0 %v180
    %821 = vmatpush1.msra.mxu0 %v179
    %822 = vmatprep.subr.mxu0 %v184
    %823 = vmatpush1.msra.mxu0 %v183
    %824 = vmatprep.subr.mxu0 %v188
    %825 = vmatpush1.msra.mxu0 %v187
    %826 = vmatprep.subr.mxu0 %v192
    %827 = vmatpush1.msra.mxu0 %v191
    %828 = vmatprep.subr.mxu0 %v196
    %829 = vmatpush1.msra.mxu0 %v195
    %830 = vmatprep.subr.mxu0 %v200
    %831 = vmatpush1.msra.mxu0 %v199
    %832 = vmatprep.subr.mxu0 %v204
    %833 = vmatpush1.msra.mxu0 %v203
    %834 = vmatprep.subr.mxu0 %v208
    %835 = vmatpush1.msra.mxu0 %v207
    %836 = vmatprep.subr.mxu0 %v212
    %837 = vmatpush1.msra.mxu0 %v211
    %838 = vmatprep.subr.mxu0 %v216
    %839 = vmatpush1.msra.mxu0 %v215
    %840 = vmatprep.subr.mxu0 %v220
    %841 = vmatpush1.msra.mxu0 %v219
    %842 = vmatprep.subr.mxu0 %v224
    %843 = vmatpush1.msra.mxu0 %v223
    %844 = vmatprep.subr.mxu0 %v228
    %845 = vmatpush1.msra.mxu0 %v227
    %846 = vmatprep.subr.mxu0 %v232
    %847 = vmatpush1.msra.mxu0 %v231
    %848 = vmatprep.subr.mxu0 %v236
    %849 = vmatpush1.msra.mxu0 %v235
    %850 = vmatprep.subr.mxu0 %v240
    %851 = vmatpush1.msra.mxu0 %v239
    %852 = vmatprep.subr.mxu0 %v244
    %853 = vmatpush1.msra.mxu0 %v243
    %854 = vmatprep.subr.mxu0 %v248
    %855 = vmatpush1.msra.mxu0 %v247
    %856 = vmatprep.subr.mxu0 %v252
    %857 = vmatpush1.msra.mxu0 %v251
    %858 = vmatprep.subr.mxu0 %v256
    %859 = vmatpush1.msra.mxu0 %v255
    %860 = vmatprep.subr.mxu0 %v260
    %861 = vmatpush1.msra.mxu0 %v259
    %862 = vmatprep.subr.mxu0 %v264
    %863 = vmatpush1.msra.mxu0 %v263
    %864 = vmatprep.subr.mxu0 %v268
    %865 = vmatpush1.msra.mxu0 %v267
    %866 = vmatprep.subr.mxu0 %v272
    %867 = vmatpush1.msra.mxu0 %v271
    %868 = vmatprep.subr.mxu0 %v276
    %869 = vmatpush1.msra.mxu0 %v275
    %870 = vmatprep.subr.mxu0 %v280
    %871 = vmatpush1.msra.mxu0 %v279
    %872 = vmatprep.subr.mxu0 %v284
    %873 = vmatpush1.msra.mxu0 %v283
    %874 = vmatprep.subr.mxu0 %v288
    %875 = vmatpush1.msra.mxu0 %v287
    %876 = vmatprep.subr.mxu0 %v292
    %877 = vmatpush1.msra.mxu0 %v291
    %878 = vmatprep.subr.mxu0 %v296
    %879 = vmatpush1.msra.mxu0 %v295
    %880 = vmatprep.subr.mxu0 %v300
    %881 = vmatpush1.msra.mxu0 %v299
    %882 = vmatprep.mubr.f32.mxu0 %v41
    %883 = vmatmul.mubr.f32.gmra.mrb[0].mxu0 %v40
    %v884 = vpop.f32.mrb[0].mxu0
    %v885 = vadd.f32 %v814, %v884
    %v886 = vpop.f32.mrb[0].mxu0
    %v887 = vadd.f32 %v816, %v886
    %888 = vdwg.mxu0
    %889 = vmatprep.subr.mxu0 %v304
    %890 = vmatpush1.msra.mxu0 %v303
    %891 = vmatprep.subr.mxu0 %v308
    %892 = vmatpush1.msra.mxu0 %v307
    %893 = vmatprep.subr.mxu0 %v312
    %894 = vmatpush1.msra.mxu0 %v311
    %895 = vmatprep.subr.mxu0 %v316
    %896 = vmatpush1.msra.mxu0 %v315
    %897 = vmatprep.subr.mxu0 %v320
    %898 = vmatpush1.msra.mxu0 %v319
    %899 = vmatprep.subr.mxu0 %v324
    %900 = vmatpush1.msra.mxu0 %v323
    %901 = vmatprep.subr.mxu0 %v328
    %902 = vmatpush1.msra.mxu0 %v327
    %903 = vmatprep.subr.mxu0 %v332
    %904 = vmatpush1.msra.mxu0 %v331
    %905 = vmatprep.subr.mxu0 %v336
    %906 = vmatpush1.msra.mxu0 %v335
    %907 = vmatprep.subr.mxu0 %v340
    %908 = vmatpush1.msra.mxu0 %v339
    %909 = vmatprep.subr.mxu0 %v344
    %910 = vmatpush1.msra.mxu0 %v343
    %911 = vmatprep.subr.mxu0 %v348
    %912 = vmatpush1.msra.mxu0 %v347
    %913 = vmatprep.subr.mxu0 %v352
    %914 = vmatpush1.msra.mxu0 %v351
    %915 = vmatprep.subr.mxu0 %v356
    %916 = vmatpush1.msra.mxu0 %v355
    %917 = vmatprep.subr.mxu0 %v360
    %918 = vmatpush1.msra.mxu0 %v359
    %919 = vmatprep.subr.mxu0 %v364
    %920 = vmatpush1.msra.mxu0 %v363
    %921 = vmatprep.subr.mxu0 %v368
    %922 = vmatpush1.msra.mxu0 %v367
    %923 = vmatprep.subr.mxu0 %v372
    %924 = vmatpush1.msra.mxu0 %v371
    %925 = vmatprep.subr.mxu0 %v376
    %926 = vmatpush1.msra.mxu0 %v375
    %927 = vmatprep.subr.mxu0 %v380
    %928 = vmatpush1.msra.mxu0 %v379
    %929 = vmatprep.subr.mxu0 %v384
    %930 = vmatpush1.msra.mxu0 %v383
    %931 = vmatprep.subr.mxu0 %v388
    %932 = vmatpush1.msra.mxu0 %v387
    %933 = vmatprep.subr.mxu0 %v392
    %934 = vmatpush1.msra.mxu0 %v391
    %935 = vmatprep.subr.mxu0 %v396
    %936 = vmatpush1.msra.mxu0 %v395
    %937 = vmatprep.subr.mxu0 %v400
    %938 = vmatpush1.msra.mxu0 %v399
    %939 = vmatprep.subr.mxu0 %v404
    %940 = vmatpush1.msra.mxu0 %v403
    %941 = vmatprep.subr.mxu0 %v408
    %942 = vmatpush1.msra.mxu0 %v407
    %943 = vmatprep.subr.mxu0 %v412
    %944 = vmatpush1.msra.mxu0 %v411
    %945 = vmatprep.subr.mxu0 %v416
    %946 = vmatpush1.msra.mxu0 %v415
    %947 = vmatprep.subr.mxu0 %v420
    %948 = vmatpush1.msra.mxu0 %v419
    %949 = vmatprep.subr.mxu0 %v424
    %950 = vmatpush1.msra.mxu0 %v423
    %951 = vmatprep.subr.mxu0 %v428
    %952 = vmatpush1.msra.mxu0 %v427
    %953 = vmatprep.mubr.f32.mxu0 %v43
    %954 = vmatmul.mubr.f32.gmra.mrb[0].mxu0 %v42
    %v955 = vpop.f32.mrb[0].mxu0
    %v956 = vadd.f32 %v885, %v955
    %v957 = vpop.f32.mrb[0].mxu0
    %v958 = vadd.f32 %v887, %v957
    %959 = vdwg.mxu0
    %960 = vmatprep.subr.mxu0 %v432
    %961 = vmatpush1.msra.mxu0 %v431
    %962 = vmatprep.subr.mxu0 %v436
    %963 = vmatpush1.msra.mxu0 %v435
    %964 = vmatprep.subr.mxu0 0.0
    %965 = vmatpush1.msra.mxu0 0.0
    %966 = vmatprep.subr.mxu0 0.0
    %967 = vmatpush1.msra.mxu0 0.0
    %968 = vmatprep.subr.mxu0 0.0
    %969 = vmatpush1.msra.mxu0 0.0
    %970 = vmatprep.subr.mxu0 0.0
    %971 = vmatpush1.msra.mxu0 0.0
    %972 = vmatprep.subr.mxu0 0.0
    %973 = vmatpush1.msra.mxu0 0.0
    %974 = vmatprep.subr.mxu0 0.0
    %975 = vmatpush1.msra.mxu0 0.0
    %976 = vmatprep.subr.mxu0 0.0
    %977 = vmatpush1.msra.mxu0 0.0
    %978 = vmatprep.subr.mxu0 0.0
    %979 = vmatpush1.msra.mxu0 0.0
    %980 = vmatprep.subr.mxu0 0.0
    %981 = vmatpush1.msra.mxu0 0.0
    %982 = vmatprep.subr.mxu0 0.0
    %983 = vmatpush1.msra.mxu0 0.0
    %984 = vmatprep.subr.mxu0 0.0
    %985 = vmatpush1.msra.mxu0 0.0
    %986 = vmatprep.subr.mxu0 0.0
    %987 = vmatpush1.msra.mxu0 0.0
    %988 = vmatprep.subr.mxu0 0.0
    %989 = vmatpush1.msra.mxu0 0.0
    %990 = vmatprep.subr.mxu0 0.0
    %991 = vmatpush1.msra.mxu0 0.0
    %992 = vmatprep.subr.mxu0 0.0
    %993 = vmatpush1.msra.mxu0 0.0
    %994 = vmatprep.subr.mxu0 0.0
    %995 = vmatpush1.msra.mxu0 0.0
    %996 = vmatprep.subr.mxu0 0.0
    %997 = vmatpush1.msra.mxu0 0.0
    %998 = vmatprep.subr.mxu0 0.0
    %999 = vmatpush1.msra.mxu0 0.0
    %1000 = vmatprep.subr.mxu0 0.0
    %1001 = vmatpush1.msra.mxu0 0.0
    %1002 = vmatprep.subr.mxu0 0.0
    %1003 = vmatpush1.msra.mxu0 0.0
    %1004 = vmatprep.subr.mxu0 0.0
    %1005 = vmatpush1.msra.mxu0 0.0
    %1006 = vmatprep.subr.mxu0 0.0
    %1007 = vmatpush1.msra.mxu0 0.0
    %1008 = vmatprep.subr.mxu0 0.0
    %1009 = vmatpush1.msra.mxu0 0.0
    %1010 = vmatprep.subr.mxu0 0.0
    %1011 = vmatpush1.msra.mxu0 0.0
    %1012 = vmatprep.subr.mxu0 0.0
    %1013 = vmatpush1.msra.mxu0 0.0
    %1014 = vmatprep.subr.mxu0 0.0
    %1015 = vmatpush1.msra.mxu0 0.0
    %1016 = vmatprep.subr.mxu0 0.0
    %1017 = vmatpush1.msra.mxu0 0.0
    %1018 = vmatprep.subr.mxu0 0.0
    %1019 = vmatpush1.msra.mxu0 0.0
    %1020 = vmatprep.subr.mxu0 0.0
    %1021 = vmatpush1.msra.mxu0 0.0
    %1022 = vmatprep.subr.mxu0 0.0
    %1023 = vmatpush1.msra.mxu0 0.0
    %1024 = vmatprep.mubr.f32.mxu0 0.0
    %1025 = vmatmul.mubr.f32.gmra.mrb[0].mxu0 %v461
    %v1026 = vpop.f32.mrb[0].mxu0
    %v1027 = vadd.f32 %v956, %v1026
    %v1028 = vpop.f32.mrb[0].mxu0
    %v1029 = vadd.f32 %v958, %v1028
    %1030 = vdwg.mxu0
    %v1031 = vmax.f32 %v743, 0.0
    %v1032 = vmax.f32 %v745, 0.0
    %v1033 = vmax.f32 %v1027, 0.0
    %v1034 = vmax.f32 %v1029, 0.0
    %v1035 = vld [vmem:[%s4] sm:$0xff]
    %v1036 = vld [vmem:[%s4 + $0x8] sm:$0xff]
    %v1037 = vld [vmem:[%s4 + $0x10] sm:$0xff]
    %v1038 = vld [vmem:[%s4 + $0x18] sm:$0xff]
    %v1039 = vld [vmem:[%s4 + $0x20] sm:$0xff]
    %v1040 = vld [vmem:[%s4 + $0x28] sm:$0xff]
    %v1041 = vld [vmem:[%s4 + $0x30] sm:$0xff]
    %v1042 = vld [vmem:[%s4 + $0x38] sm:$0xff]
    %v1043 = vld [vmem:[%s4 + $0x40] sm:$0xff]
    %v1044 = vld [vmem:[%s4 + $0x48] sm:$0xff]
    %v1045 = vld [vmem:[%s4 + $0x50] sm:$0xff]
    %v1046 = vld [vmem:[%s4 + $0x58] sm:$0xff]
    %v1047 = vld [vmem:[%s4 + $0x60] sm:$0xff]
    %v1048 = vld [vmem:[%s4 + $0x68] sm:$0xff]
    %v1049 = vld [vmem:[%s4 + $0x70] sm:$0xff]
    %v1050 = vld [vmem:[%s4 + $0x78] sm:$0xff]
    %v1051 = vld [vmem:[%s4 + $0x80] sm:$0xff]
    %v1052 = vld [vmem:[%s4 + $0x88] sm:$0xff]
    %v1053 = vld [vmem:[%s4 + $0x90] sm:$0xff]
    %v1054 = vld [vmem:[%s4 + $0x98] sm:$0xff]
    %v1055 = vld [vmem:[%s4 + $0xa0] sm:$0xff]
    %v1056 = vld [vmem:[%s4 + $0xa8] sm:$0xff]
    %v1057 = vld [vmem:[%s4 + $0xb0] sm:$0xff]
    %v1058 = vld [vmem:[%s4 + $0xb8] sm:$0xff]
    %v1059 = vld [vmem:[%s4 + $0xc0] sm:$0xff]
    %v1060 = vld [vmem:[%s4 + $0xc8] sm:$0xff]
    %v1061 = vld [vmem:[%s4 + $0xd0] sm:$0xff]
    %v1062 = vld [vmem:[%s4 + $0xd8] sm:$0xff]
    %v1063 = vld [vmem:[%s4 + $0xe0] sm:$0xff]
    %v1064 = vld [vmem:[%s4 + $0xe8] sm:$0xff]
    %v1065 = vld [vmem:[%s4 + $0xf0] sm:$0xff]
    %v1066 = vld [vmem:[%s4 + $0xf8] sm:$0xff]
    %v1067 = vld [vmem:[%s4 + $0x100] sm:$0xff]
    %v1068 = vld [vmem:[%s4 + $0x108] sm:$0xff]
    %v1069 = vld [vmem:[%s4 + $0x110] sm:$0xff]
    %v1070 = vld [vmem:[%s4 + $0x118] sm:$0xff]
    %v1071 = vld [vmem:[%s4 + $0x120] sm:$0xff]
    %v1072 = vld [vmem:[%s4 + $0x128] sm:$0xff]
    %v1073 = vld [vmem:[%s4 + $0x130] sm:$0xff]
    %v1074 = vld [vmem:[%s4 + $0x138] sm:$0xff]
    %v1075 = vld [vmem:[%s4 + $0x140] sm:$0xff]
    %v1076 = vld [vmem:[%s4 + $0x148] sm:$0xff]
    %v1077 = vld [vmem:[%s4 + $0x150] sm:$0xff]
    %v1078 = vld [vmem:[%s4 + $0x158] sm:$0xff]
    %v1079 = vld [vmem:[%s4 + $0x160] sm:$0xff]
    %v1080 = vld [vmem:[%s4 + $0x168] sm:$0xff]
    %v1081 = vld [vmem:[%s4 + $0x170] sm:$0xff]
    %v1082 = vld [vmem:[%s4 + $0x178] sm:$0xff]
    %v1083 = vld [vmem:[%s4 + $0x180] sm:$0xff]
    %v1084 = vld [vmem:[%s4 + $0x188] sm:$0xff]
    %v1085 = vld [vmem:[%s5] sm:$0x1]
    %v1087 = vlaneseq
    %v1088 = vshrl.u32 %v1087, 7
    %v1089 = vsub.s32 0, %v1088
    %v1090 = vrot.slane %v1085, %v1089
    %v1093 = vsel %vm459, %v1034, 0
    %1095 = vmatprep.subr.mxu0 0.0
    %1096 = vmatpush1.msra.mxu0 %v1035
    %1097 = vmatprep.subr.mxu0 0.0
    %1098 = vmatpush1.msra.mxu0 %v1036
    %1099 = vmatprep.subr.mxu0 0.0
    %1100 = vmatpush1.msra.mxu0 %v1037
    %1101 = vmatprep.subr.mxu0 0.0
    %1102 = vmatpush1.msra.mxu0 %v1038
    %1103 = vmatprep.subr.mxu0 0.0
    %1104 = vmatpush1.msra.mxu0 %v1039
    %1105 = vmatprep.subr.mxu0 0.0
    %1106 = vmatpush1.msra.mxu0 %v1040
    %1107 = vmatprep.subr.mxu0 0.0
    %1108 = vmatpush1.msra.mxu0 %v1041
    %1109 = vmatprep.subr.mxu0 0.0
    %1110 = vmatpush1.msra.mxu0 %v1042
    %1111 = vmatprep.subr.mxu0 0.0
    %1112 = vmatpush1.msra.mxu0 %v1043
    %1113 = vmatprep.subr.mxu0 0.0
    %1114 = vmatpush1.msra.mxu0 %v1044
    %1115 = vmatprep.subr.mxu0 0.0
    %1116 = vmatpush1.msra.mxu0 %v1045
    %1117 = vmatprep.subr.mxu0 0.0
    %1118 = vmatpush1.msra.mxu0 %v1046
    %1119 = vmatprep.subr.mxu0 0.0
    %1120 = vmatpush1.msra.mxu0 %v1047
    %1121 = vmatprep.subr.mxu0 0.0
    %1122 = vmatpush1.msra.mxu0 %v1048
    %1123 = vmatprep.subr.mxu0 0.0
    %1124 = vmatpush1.msra.mxu0 %v1049
    %1125 = vmatprep.subr.mxu0 0.0
    %1126 = vmatpush1.msra.mxu0 %v1050
    %1127 = vmatprep.subr.mxu0 0.0
    %1128 = vmatpush1.msra.mxu0 %v1051
    %1129 = vmatprep.subr.mxu0 0.0
    %1130 = vmatpush1.msra.mxu0 %v1052
    %1131 = vmatprep.subr.mxu0 0.0
    %1132 = vmatpush1.msra.mxu0 %v1053
    %1133 = vmatprep.subr.mxu0 0.0
    %1134 = vmatpush1.msra.mxu0 %v1054
    %1135 = vmatprep.subr.mxu0 0.0
    %1136 = vmatpush1.msra.mxu0 %v1055
    %1137 = vmatprep.subr.mxu0 0.0
    %1138 = vmatpush1.msra.mxu0 %v1056
    %1139 = vmatprep.subr.mxu0 0.0
    %1140 = vmatpush1.msra.mxu0 %v1057
    %1141 = vmatprep.subr.mxu0 0.0
    %1142 = vmatpush1.msra.mxu0 %v1058
    %1143 = vmatprep.subr.mxu0 0.0
    %1144 = vmatpush1.msra.mxu0 %v1059
    %1145 = vmatprep.subr.mxu0 0.0
    %1146 = vmatpush1.msra.mxu0 %v1060
    %1147 = vmatprep.subr.mxu0 0.0
    %1148 = vmatpush1.msra.mxu0 %v1061
    %1149 = vmatprep.subr.mxu0 0.0
    %1150 = vmatpush1.msra.mxu0 %v1062
    %1151 = vmatprep.subr.mxu0 0.0
    %1152 = vmatpush1.msra.mxu0 %v1063
    %1153 = vmatprep.subr.mxu0 0.0
    %1154 = vmatpush1.msra.mxu0 %v1064
    %1155 = vmatprep.subr.mxu0 0.0
    %1156 = vmatpush1.msra.mxu0 %v1065
    %1157 = vmatprep.subr.mxu0 0.0
    %1158 = vmatpush1.msra.mxu0 %v1066
    %1159 = vmatprep.mubr.f32.mxu0 %v1032
    %1160 = vmatmul.mubr.f32.gmra.mrb[0].mxu0 %v1031
    %v1161 = vpop.f32.mrb[0].mxu0
    %v1162 = vadd.f32 %v1090, %v1161
    %v1163 = vpop.f32.mrb[0].mxu0
    %1164 = vdwg.mxu0
    %1165 = vmatprep.subr.mxu0 0.0
    %1166 = vmatpush1.msra.mxu0 %v1067
    %1167 = vmatprep.subr.mxu0 0.0
    %1168 = vmatpush1.msra.mxu0 %v1068
    %1169 = vmatprep.subr.mxu0 0.0
    %1170 = vmatpush1.msra.mxu0 %v1069
    %1171 = vmatprep.subr.mxu0 0.0
    %1172 = vmatpush1.msra.mxu0 %v1070
    %1173 = vmatprep.subr.mxu0 0.0
    %1174 = vmatpush1.msra.mxu0 %v1071
    %1175 = vmatprep.subr.mxu0 0.0
    %1176 = vmatpush1.msra.mxu0 %v1072
    %1177 = vmatprep.subr.mxu0 0.0
    %1178 = vmatpush1.msra.mxu0 %v1073
    %1179 = vmatprep.subr.mxu0 0.0
    %1180 = vmatpush1.msra.mxu0 %v1074
    %1181 = vmatprep.subr.mxu0 0.0
    %1182 = vmatpush1.msra.mxu0 %v1075
    %1183 = vmatprep.subr.mxu0 0.0
    %1184 = vmatpush1.msra.mxu0 %v1076
    %1185 = vmatprep.subr.mxu0 0.0
    %1186 = vmatpush1.msra.mxu0 %v1077
    %1187 = vmatprep.subr.mxu0 0.0
    %1188 = vmatpush1.msra.mxu0 %v1078
    %1189 = vmatprep.subr.mxu0 0.0
    %1190 = vmatpush1.msra.mxu0 %v1079
    %1191 = vmatprep.subr.mxu0 0.0
    %1192 = vmatpush1.msra.mxu0 %v1080
    %1193 = vmatprep.subr.mxu0 0.0
    %1194 = vmatpush1.msra.mxu0 %v1081
    %1195 = vmatprep.subr.mxu0 0.0
    %1196 = vmatpush1.msra.mxu0 %v1082
    %1197 = vmatprep.subr.mxu0 0.0
    %1198 = vmatpush1.msra.mxu0 %v1083
    %1199 = vmatprep.subr.mxu0 0.0
    %1200 = vmatpush1.msra.mxu0 %v1084
    %1201 = vmatprep.subr.mxu0 0.0
    %1202 = vmatpush1.msra.mxu0 0.0
    %1203 = vmatprep.subr.mxu0 0.0
    %1204 = vmatpush1.msra.mxu0 0.0
    %1205 = vmatprep.subr.mxu0 0.0
    %1206 = vmatpush1.msra.mxu0 0.0
    %1207 = vmatprep.subr.mxu0 0.0
    %1208 = vmatpush1.msra.mxu0 0.0
    %1209 = vmatprep.subr.mxu0 0.0
    %1210 = vmatpush1.msra.mxu0 0.0
    %1211 = vmatprep.subr.mxu0 0.0
    %1212 = vmatpush1.msra.mxu0 0.0
    %1213 = vmatprep.subr.mxu0 0.0
    %1214 = vmatpush1.msra.mxu0 0.0
    %1215 = vmatprep.subr.mxu0 0.0
    %1216 = vmatpush1.msra.mxu0 0.0
    %1217 = vmatprep.subr.mxu0 0.0
    %1218 = vmatpush1.msra.mxu0 0.0
    %1219 = vmatprep.subr.mxu0 0.0
    %1220 = vmatpush1.msra.mxu0 0.0
    %1221 = vmatprep.subr.mxu0 0.0
    %1222 = vmatpush1.msra.mxu0 0.0
    %1223 = vmatprep.subr.mxu0 0.0
    %1224 = vmatpush1.msra.mxu0 0.0
    %1225 = vmatprep.subr.mxu0 0.0
    %1226 = vmatpush1.msra.mxu0 0.0
    %1227 = vmatprep.subr.mxu0 0.0
    %1228 = vmatpush1.msra.mxu0 0.0
    %1229 = vmatprep.mubr.f32.mxu0 %v1093
    %1230 = vmatmul.mubr.f32.gmra.mrb[0].mxu0 %v1033
    %v1231 = vpop.f32.mrb[0].mxu0
    %v1232 = vadd.f32 %v1162, %v1231
    %v1233 = vpop.f32.mrb[0].mxu0
    %1234 = vdwg.mxu0
    %1235 = vst [vmem:[%s11] sm:$0xff] %v1232
    %v1236 = vmul.f32 %v1232, 0.5
    %v1237 = vmul.f32 %v1236, 1.442695
    %v1238 = vpow.pop %v1237
    %v1239 = vld [vmem:[%s1] sm:$0xff]
    %1241 = vrot.lane.b32.xlu0 %v1239, 20
    %v1242 = vpop.permute.xlu0 %1241
    %v1244 = vmul.f32 %v1238, %v1242
    %1246 = vrot.lane.b32.xlu0 %v1244, 108
    %v1247 = vpop.permute.xlu0 %1246
    %v1249 = vadd.f32 %v1232, %v1247
    %v1250 = vld [vmem:[%s6] sm:$0xff]
    %v1251 = vld [vmem:[%s6 + $0x8] sm:$0xff]
    %v1252 = vld [vmem:[%s6 + $0x10] sm:$0xff]
    %v1253 = vld [vmem:[%s6 + $0x18] sm:$0xff]
    %v1254 = vld [vmem:[%s6 + $0x20] sm:$0xff]
    %v1255 = vld [vmem:[%s6 + $0x28] sm:$0xff]
    %v1256 = vld [vmem:[%s6 + $0x30] sm:$0xff]
    %v1257 = vld [vmem:[%s6 + $0x38] sm:$0xff]
    %v1258 = vld [vmem:[%s6 + $0x40] sm:$0xf]
    %v1259 = vld [vmem:[%s6 + $0x48] sm:$0xf]
    %v1260 = vld [vmem:[%s6 + $0x50] sm:$0xf]
    %v1261 = vld [vmem:[%s6 + $0x58] sm:$0xf]
    %v1262 = vld [vmem:[%s7] sm:$0xf]
    %v1264 = vlaneseq
    %v1265 = vshrl.u32 %v1264, 7
    %v1266 = vsub.s32 0, %v1265
    %v1267 = vrot.slane %v1262, %v1266
    %v1268 = vlaneseq
    %v1269 = vshrl.u32 %v1268, 7
    %v1270 = vsub.s32 1, %v1269
    %v1271 = vrot.slane %v1262, %v1270
    %v1272 = vlaneseq
    %v1273 = vshrl.u32 %v1272, 7
    %v1274 = vsub.s32 2, %v1273
    %v1275 = vrot.slane %v1262, %v1274
    %v1276 = vlaneseq
    %v1277 = vshrl.u32 %v1276, 7
    %v1278 = vsub.s32 3, %v1277
    %v1279 = vrot.slane %v1262, %v1278
    %vm1284 = vcmask 162816
    %v1286 = vsel %vm1284, %v1249, 0
    %vm1288 = vcmask 1043456
    %v1290 = vsel %vm1288, %v1258, 0
    %v1293 = vsel %vm1288, %v1259, 0
    %v1296 = vsel %vm1288, %v1260, 0
    %v1299 = vsel %vm1288, %v1261, 0
    %1301 = vmatprep.subr.mxu0 %v1251
    %1302 = vmatpush1.msra.mxu0 %v1250
    %1303 = vmatprep.subr.mxu0 %v1255
    %1304 = vmatpush1.msra.mxu0 %v1254
    %1305 = vmatprep.subr.mxu0 %v1293
    %1306 = vmatpush1.msra.mxu0 %v1290
    %1307 = vmatprep.subr.mxu0 0.0
    %1308 = vmatpush1.msra.mxu0 0.0
    %1309 = vmatprep.subr.mxu0 0.0
    %1310 = vmatpush1.msra.mxu0 0.0
    %1311 = vmatprep.subr.mxu0 0.0
    %1312 = vmatpush1.msra.mxu0 0.0
    %1313 = vmatprep.subr.mxu0 0.0
    %1314 = vmatpush1.msra.mxu0 0.0
    %1315 = vmatprep.subr.mxu0 0.0
    %1316 = vmatpush1.msra.mxu0 0.0
    %1317 = vmatprep.subr.mxu0 0.0
    %1318 = vmatpush1.msra.mxu0 0.0
    %1319 = vmatprep.subr.mxu0 0.0
    %1320 = vmatpush1.msra.mxu0 0.0
    %1321 = vmatprep.subr.mxu0 0.0
    %1322 = vmatpush1.msra.mxu0 0.0
    %1323 = vmatprep.subr.mxu0 0.0
    %1324 = vmatpush1.msra.mxu0 0.0
    %1325 = vmatprep.subr.mxu0 0.0
    %1326 = vmatpush1.msra.mxu0 0.0
    %1327 = vmatprep.subr.mxu0 0.0
    %1328 = vmatpush1.msra.mxu0 0.0
    %1329 = vmatprep.subr.mxu0 0.0
    %1330 = vmatpush1.msra.mxu0 0.0
    %1331 = vmatprep.subr.mxu0 0.0
    %1332 = vmatpush1.msra.mxu0 0.0
    %1333 = vmatprep.subr.mxu0 0.0
    %1334 = vmatpush1.msra.mxu0 0.0
    %1335 = vmatprep.subr.mxu0 0.0
    %1336 = vmatpush1.msra.mxu0 0.0
    %1337 = vmatprep.subr.mxu0 0.0
    %1338 = vmatpush1.msra.mxu0 0.0
    %1339 = vmatprep.subr.mxu0 0.0
    %1340 = vmatpush1.msra.mxu0 0.0
    %1341 = vmatprep.subr.mxu0 0.0
    %1342 = vmatpush1.msra.mxu0 0.0
    %1343 = vmatprep.subr.mxu0 0.0
    %1344 = vmatpush1.msra.mxu0 0.0
    %1345 = vmatprep.subr.mxu0 0.0
    %1346 = vmatpush1.msra.mxu0 0.0
    %1347 = vmatprep.subr.mxu0 0.0
    %1348 = vmatpush1.msra.mxu0 0.0
    %1349 = vmatprep.subr.mxu0 0.0
    %1350 = vmatpush1.msra.mxu0 0.0
    %1351 = vmatprep.subr.mxu0 0.0
    %1352 = vmatpush1.msra.mxu0 0.0
    %1353 = vmatprep.subr.mxu0 0.0
    %1354 = vmatpush1.msra.mxu0 0.0
    %1355 = vmatprep.subr.mxu0 0.0
    %1356 = vmatpush1.msra.mxu0 0.0
    %1357 = vmatprep.subr.mxu0 0.0
    %1358 = vmatpush1.msra.mxu0 0.0
    %1359 = vmatprep.subr.mxu0 0.0
    %1360 = vmatpush1.msra.mxu0 0.0
    %1361 = vmatprep.subr.mxu0 0.0
    %1362 = vmatpush1.msra.mxu0 0.0
    %1363 = vmatprep.subr.mxu0 0.0
    %1364 = vmatpush1.msra.mxu0 0.0
    %1365 = vmatprep.mubr.f32.mxu0 0.0
    %1366 = vmatmul.mubr.f32.gmra.mrb[0].mxu0 %v1286
    %v1367 = vpop.f32.mrb[0].mxu0
    %v1368 = vadd.f32 %v1267, %v1367
    %v1369 = vpop.f32.mrb[0].mxu0
    %v1370 = vadd.f32 %v1271, %v1369
    %1371 = vdwg.mxu0
    %1372 = vmatprep.subr.mxu0 %v1253
    %1373 = vmatpush1.msra.mxu0 %v1252
    %1374 = vmatprep.subr.mxu0 %v1257
    %1375 = vmatpush1.msra.mxu0 %v1256
    %1376 = vmatprep.subr.mxu0 %v1299
    %1377 = vmatpush1.msra.mxu0 %v1296
    %1378 = vmatprep.subr.mxu0 0.0
    %1379 = vmatpush1.msra.mxu0 0.0
    %1380 = vmatprep.subr.mxu0 0.0
    %1381 = vmatpush1.msra.mxu0 0.0
    %1382 = vmatprep.subr.mxu0 0.0
    %1383 = vmatpush1.msra.mxu0 0.0
    %1384 = vmatprep.subr.mxu0 0.0
    %1385 = vmatpush1.msra.mxu0 0.0
    %1386 = vmatprep.subr.mxu0 0.0
    %1387 = vmatpush1.msra.mxu0 0.0
    %1388 = vmatprep.subr.mxu0 0.0
    %1389 = vmatpush1.msra.mxu0 0.0
    %1390 = vmatprep.subr.mxu0 0.0
    %1391 = vmatpush1.msra.mxu0 0.0
    %1392 = vmatprep.subr.mxu0 0.0
    %1393 = vmatpush1.msra.mxu0 0.0
    %1394 = vmatprep.subr.mxu0 0.0
    %1395 = vmatpush1.msra.mxu0 0.0
    %1396 = vmatprep.subr.mxu0 0.0
    %1397 = vmatpush1.msra.mxu0 0.0
    %1398 = vmatprep.subr.mxu0 0.0
    %1399 = vmatpush1.msra.mxu0 0.0
    %1400 = vmatprep.subr.mxu0 0.0
    %1401 = vmatpush1.msra.mxu0 0.0
    %1402 = vmatprep.subr.mxu0 0.0
    %1403 = vmatpush1.msra.mxu0 0.0
    %1404 = vmatprep.subr.mxu0 0.0
    %1405 = vmatpush1.msra.mxu0 0.0
    %1406 = vmatprep.subr.mxu0 0.0
    %1407 = vmatpush1.msra.mxu0 0.0
    %1408 = vmatprep.subr.mxu0 0.0
    %1409 = vmatpush1.msra.mxu0 0.0
    %1410 = vmatprep.subr.mxu0 0.0
    %1411 = vmatpush1.msra.mxu0 0.0
    %1412 = vmatprep.subr.mxu0 0.0
    %1413 = vmatpush1.msra.mxu0 0.0
    %1414 = vmatprep.subr.mxu0 0.0
    %1415 = vmatpush1.msra.mxu0 0.0
    %1416 = vmatprep.subr.mxu0 0.0
    %1417 = vmatpush1.msra.mxu0 0.0
    %1418 = vmatprep.subr.mxu0 0.0
    %1419 = vmatpush1.msra.mxu0 0.0
    %1420 = vmatprep.subr.mxu0 0.0
    %1421 = vmatpush1.msra.mxu0 0.0
    %1422 = vmatprep.subr.mxu0 0.0
    %1423 = vmatpush1.msra.mxu0 0.0
    %1424 = vmatprep.subr.mxu0 0.0
    %1425 = vmatpush1.msra.mxu0 0.0
    %1426 = vmatprep.subr.mxu0 0.0
    %1427 = vmatpush1.msra.mxu0 0.0
    %1428 = vmatprep.subr.mxu0 0.0
    %1429 = vmatpush1.msra.mxu0 0.0
    %1430 = vmatprep.subr.mxu0 0.0
    %1431 = vmatpush1.msra.mxu0 0.0
    %1432 = vmatprep.subr.mxu0 0.0
    %1433 = vmatpush1.msra.mxu0 0.0
    %1434 = vmatprep.subr.mxu0 0.0
    %1435 = vmatpush1.msra.mxu0 0.0
    %1436 = vmatprep.mubr.f32.mxu0 0.0
    %1437 = vmatmul.mubr.f32.gmra.mrb[0].mxu0 %v1286
    %v1438 = vpop.f32.mrb[0].mxu0
    %v1439 = vadd.f32 %v1275, %v1438
    %v1440 = vpop.f32.mrb[0].mxu0
    %v1441 = vadd.f32 %v1279, %v1440
    %1442 = vdwg.mxu0
    %v1443 = vmax.f32 %v1368, 0.0
    %v1444 = vmax.f32 %v1370, 0.0
    %v1445 = vmax.f32 %v1439, 0.0
    %v1446 = vmax.f32 %v1441, 0.0
    %v1447 = vld [vmem:[%s8] sm:$0xff]
    %v1448 = vld [vmem:[%s8 + $0x8] sm:$0xff]
    %v1449 = vld [vmem:[%s8 + $0x10] sm:$0xff]
    %v1450 = vld [vmem:[%s8 + $0x18] sm:$0xff]
    %v1451 = vld [vmem:[%s8 + $0x20] sm:$0xff]
    %v1452 = vld [vmem:[%s8 + $0x28] sm:$0xff]
    %v1453 = vld [vmem:[%s8 + $0x30] sm:$0xff]
    %v1454 = vld [vmem:[%s8 + $0x38] sm:$0xff]
    %v1455 = vld [vmem:[%s8 + $0x40] sm:$0xff]
    %v1456 = vld [vmem:[%s8 + $0x48] sm:$0xff]
    %v1457 = vld [vmem:[%s8 + $0x50] sm:$0xff]
    %v1458 = vld [vmem:[%s8 + $0x58] sm:$0xff]
    %v1459 = vld [vmem:[%s8 + $0x60] sm:$0xff]
    %v1460 = vld [vmem:[%s8 + $0x68] sm:$0xff]
    %v1461 = vld [vmem:[%s8 + $0x70] sm:$0xff]
    %v1462 = vld [vmem:[%s8 + $0x78] sm:$0xff]
    %v1463 = vld [vmem:[%s8 + $0x80] sm:$0xff]
    %v1464 = vld [vmem:[%s8 + $0x88] sm:$0xff]
    %v1465 = vld [vmem:[%s8 + $0x90] sm:$0xff]
    %v1466 = vld [vmem:[%s8 + $0x98] sm:$0xff]
    %v1467 = vld [vmem:[%s8 + $0xa0] sm:$0xff]
    %v1468 = vld [vmem:[%s8 + $0xa8] sm:$0xff]
    %v1469 = vld [vmem:[%s8 + $0xb0] sm:$0xff]
    %v1470 = vld [vmem:[%s8 + $0xb8] sm:$0xff]
    %v1471 = vld [vmem:[%s8 + $0xc0] sm:$0xff]
    %v1472 = vld [vmem:[%s8 + $0xc8] sm:$0xff]
    %v1473 = vld [vmem:[%s8 + $0xd0] sm:$0xff]
    %v1474 = vld [vmem:[%s8 + $0xd8] sm:$0xff]
    %v1475 = vld [vmem:[%s8 + $0xe0] sm:$0xff]
    %v1476 = vld [vmem:[%s8 + $0xe8] sm:$0xff]
    %v1477 = vld [vmem:[%s8 + $0xf0] sm:$0xff]
    %v1478 = vld [vmem:[%s8 + $0xf8] sm:$0xff]
    %v1479 = vld [vmem:[%s8 + $0x100] sm:$0xff]
    %v1480 = vld [vmem:[%s8 + $0x108] sm:$0xff]
    %v1481 = vld [vmem:[%s8 + $0x110] sm:$0xff]
    %v1482 = vld [vmem:[%s8 + $0x118] sm:$0xff]
    %v1483 = vld [vmem:[%s8 + $0x120] sm:$0xff]
    %v1484 = vld [vmem:[%s8 + $0x128] sm:$0xff]
    %v1485 = vld [vmem:[%s8 + $0x130] sm:$0xff]
    %v1486 = vld [vmem:[%s8 + $0x138] sm:$0xff]
    %v1487 = vld [vmem:[%s8 + $0x140] sm:$0xff]
    %v1488 = vld [vmem:[%s8 + $0x148] sm:$0xff]
    %v1489 = vld [vmem:[%s8 + $0x150] sm:$0xff]
    %v1490 = vld [vmem:[%s8 + $0x158] sm:$0xff]
    %v1491 = vld [vmem:[%s8 + $0x160] sm:$0xff]
    %v1492 = vld [vmem:[%s8 + $0x168] sm:$0xff]
    %v1493 = vld [vmem:[%s8 + $0x170] sm:$0xff]
    %v1494 = vld [vmem:[%s8 + $0x178] sm:$0xff]
    %v1495 = vld [vmem:[%s8 + $0x180] sm:$0xff]
    %v1496 = vld [vmem:[%s8 + $0x188] sm:$0xff]
    %v1497 = vld [vmem:[%s8 + $0x190] sm:$0xff]
    %v1498 = vld [vmem:[%s8 + $0x198] sm:$0xff]
    %v1499 = vld [vmem:[%s8 + $0x1a0] sm:$0xff]
    %v1500 = vld [vmem:[%s8 + $0x1a8] sm:$0xff]
    %v1501 = vld [vmem:[%s8 + $0x1b0] sm:$0xff]
    %v1502 = vld [vmem:[%s8 + $0x1b8] sm:$0xff]
    %v1503 = vld [vmem:[%s8 + $0x1c0] sm:$0xff]
    %v1504 = vld [vmem:[%s8 + $0x1c8] sm:$0xff]
    %v1505 = vld [vmem:[%s8 + $0x1d0] sm:$0xff]
    %v1506 = vld [vmem:[%s8 + $0x1d8] sm:$0xff]
    %v1507 = vld [vmem:[%s8 + $0x1e0] sm:$0xff]
    %v1508 = vld [vmem:[%s8 + $0x1e8] sm:$0xff]
    %v1509 = vld [vmem:[%s8 + $0x1f0] sm:$0xff]
    %v1510 = vld [vmem:[%s8 + $0x1f8] sm:$0xff]
    %v1511 = vld [vmem:[%s8 + $0x200] sm:$0xff]
    %v1512 = vld [vmem:[%s8 + $0x208] sm:$0xff]
    %v1513 = vld [vmem:[%s8 + $0x210] sm:$0xff]
    %v1514 = vld [vmem:[%s8 + $0x218] sm:$0xff]
    %v1515 = vld [vmem:[%s8 + $0x220] sm:$0xff]
    %v1516 = vld [vmem:[%s8 + $0x228] sm:$0xff]
    %v1517 = vld [vmem:[%s8 + $0x230] sm:$0xff]
    %v1518 = vld [vmem:[%s8 + $0x238] sm:$0xff]
    %v1519 = vld [vmem:[%s8 + $0x240] sm:$0xff]
    %v1520 = vld [vmem:[%s8 + $0x248] sm:$0xff]
    %v1521 = vld [vmem:[%s8 + $0x250] sm:$0xff]
    %v1522 = vld [vmem:[%s8 + $0x258] sm:$0xff]
    %v1523 = vld [vmem:[%s8 + $0x260] sm:$0xff]
    %v1524 = vld [vmem:[%s8 + $0x268] sm:$0xff]
    %v1525 = vld [vmem:[%s8 + $0x270] sm:$0xff]
    %v1526 = vld [vmem:[%s8 + $0x278] sm:$0xff]
    %v1527 = vld [vmem:[%s8 + $0x280] sm:$0xff]
    %v1528 = vld [vmem:[%s8 + $0x288] sm:$0xff]
    %v1529 = vld [vmem:[%s8 + $0x290] sm:$0xff]
    %v1530 = vld [vmem:[%s8 + $0x298] sm:$0xff]
    %v1531 = vld [vmem:[%s8 + $0x2a0] sm:$0xff]
    %v1532 = vld [vmem:[%s8 + $0x2a8] sm:$0xff]
    %v1533 = vld [vmem:[%s8 + $0x2b0] sm:$0xff]
    %v1534 = vld [vmem:[%s8 + $0x2b8] sm:$0xff]
    %v1535 = vld [vmem:[%s8 + $0x2c0] sm:$0xff]
    %v1536 = vld [vmem:[%s8 + $0x2c8] sm:$0xff]
    %v1537 = vld [vmem:[%s8 + $0x2d0] sm:$0xff]
    %v1538 = vld [vmem:[%s8 + $0x2d8] sm:$0xff]
    %v1539 = vld [vmem:[%s8 + $0x2e0] sm:$0xff]
    %v1540 = vld [vmem:[%s8 + $0x2e8] sm:$0xff]
    %v1541 = vld [vmem:[%s8 + $0x2f0] sm:$0xff]
    %v1542 = vld [vmem:[%s8 + $0x2f8] sm:$0xff]
    %v1543 = vld [vmem:[%s8 + $0x300] sm:$0xff]
    %v1544 = vld [vmem:[%s8 + $0x308] sm:$0xff]
    %v1545 = vld [vmem:[%s8 + $0x310] sm:$0xff]
    %v1546 = vld [vmem:[%s8 + $0x318] sm:$0xff]
    %v1547 = vld [vmem:[%s8 + $0x320] sm:$0xff]
    %v1548 = vld [vmem:[%s8 + $0x328] sm:$0xff]
    %v1549 = vld [vmem:[%s8 + $0x330] sm:$0xff]
    %v1550 = vld [vmem:[%s8 + $0x338] sm:$0xff]
    %v1551 = vld [vmem:[%s8 + $0x340] sm:$0xff]
    %v1552 = vld [vmem:[%s8 + $0x348] sm:$0xff]
    %v1553 = vld [vmem:[%s8 + $0x350] sm:$0xff]
    %v1554 = vld [vmem:[%s8 + $0x358] sm:$0xff]
    %v1555 = vld [vmem:[%s8 + $0x360] sm:$0xff]
    %v1556 = vld [vmem:[%s8 + $0x368] sm:$0xff]
    %v1557 = vld [vmem:[%s8 + $0x370] sm:$0xff]
    %v1558 = vld [vmem:[%s8 + $0x378] sm:$0xff]
    %v1559 = vld [vmem:[%s8 + $0x380] sm:$0xff]
    %v1560 = vld [vmem:[%s8 + $0x388] sm:$0xff]
    %v1561 = vld [vmem:[%s8 + $0x390] sm:$0xff]
    %v1562 = vld [vmem:[%s8 + $0x398] sm:$0xff]
    %v1563 = vld [vmem:[%s8 + $0x3a0] sm:$0xff]
    %v1564 = vld [vmem:[%s8 + $0x3a8] sm:$0xff]
    %v1565 = vld [vmem:[%s8 + $0x3b0] sm:$0xff]
    %v1566 = vld [vmem:[%s8 + $0x3b8] sm:$0xff]
    %v1567 = vld [vmem:[%s8 + $0x3c0] sm:$0xff]
    %v1568 = vld [vmem:[%s8 + $0x3c8] sm:$0xff]
    %v1569 = vld [vmem:[%s8 + $0x3d0] sm:$0xff]
    %v1570 = vld [vmem:[%s8 + $0x3d8] sm:$0xff]
    %v1571 = vld [vmem:[%s8 + $0x3e0] sm:$0xff]
    %v1572 = vld [vmem:[%s8 + $0x3e8] sm:$0xff]
    %v1573 = vld [vmem:[%s8 + $0x3f0] sm:$0xff]
    %v1574 = vld [vmem:[%s8 + $0x3f8] sm:$0xff]
    %v1575 = vld [vmem:[%s8 + $0x400] sm:$0xff]
    %v1576 = vld [vmem:[%s8 + $0x408] sm:$0xff]
    %v1577 = vld [vmem:[%s8 + $0x410] sm:$0xff]
    %v1578 = vld [vmem:[%s8 + $0x418] sm:$0xff]
    %v1579 = vld [vmem:[%s8 + $0x420] sm:$0xff]
    %v1580 = vld [vmem:[%s8 + $0x428] sm:$0xff]
    %v1581 = vld [vmem:[%s8 + $0x430] sm:$0xff]
    %v1582 = vld [vmem:[%s8 + $0x438] sm:$0xff]
    %v1583 = vld [vmem:[%s8 + $0x440] sm:$0xff]
    %v1584 = vld [vmem:[%s8 + $0x448] sm:$0xff]
    %v1585 = vld [vmem:[%s8 + $0x450] sm:$0xff]
    %v1586 = vld [vmem:[%s8 + $0x458] sm:$0xff]
    %v1587 = vld [vmem:[%s8 + $0x460] sm:$0xff]
    %v1588 = vld [vmem:[%s8 + $0x468] sm:$0xff]
    %v1589 = vld [vmem:[%s8 + $0x470] sm:$0xff]
    %v1590 = vld [vmem:[%s8 + $0x478] sm:$0xff]
    %v1591 = vld [vmem:[%s8 + $0x480] sm:$0xff]
    %v1592 = vld [vmem:[%s8 + $0x488] sm:$0xff]
    %v1593 = vld [vmem:[%s8 + $0x490] sm:$0xff]
    %v1594 = vld [vmem:[%s8 + $0x498] sm:$0xff]
    %v1595 = vld [vmem:[%s8 + $0x4a0] sm:$0xff]
    %v1596 = vld [vmem:[%s8 + $0x4a8] sm:$0xff]
    %v1597 = vld [vmem:[%s8 + $0x4b0] sm:$0xff]
    %v1598 = vld [vmem:[%s8 + $0x4b8] sm:$0xff]
    %v1599 = vld [vmem:[%s8 + $0x4c0] sm:$0xff]
    %v1600 = vld [vmem:[%s8 + $0x4c8] sm:$0xff]
    %v1601 = vld [vmem:[%s8 + $0x4d0] sm:$0xff]
    %v1602 = vld [vmem:[%s8 + $0x4d8] sm:$0xff]
    %v1603 = vld [vmem:[%s8 + $0x4e0] sm:$0xff]
    %v1604 = vld [vmem:[%s8 + $0x4e8] sm:$0xff]
    %v1605 = vld [vmem:[%s8 + $0x4f0] sm:$0xff]
    %v1606 = vld [vmem:[%s8 + $0x4f8] sm:$0xff]
    %v1607 = vld [vmem:[%s8 + $0x500] sm:$0xff]
    %v1608 = vld [vmem:[%s8 + $0x508] sm:$0xff]
    %v1609 = vld [vmem:[%s8 + $0x510] sm:$0xff]
    %v1610 = vld [vmem:[%s8 + $0x518] sm:$0xff]
    %v1611 = vld [vmem:[%s8 + $0x520] sm:$0xff]
    %v1612 = vld [vmem:[%s8 + $0x528] sm:$0xff]
    %v1613 = vld [vmem:[%s8 + $0x530] sm:$0xff]
    %v1614 = vld [vmem:[%s8 + $0x538] sm:$0xff]
    %v1615 = vld [vmem:[%s8 + $0x540] sm:$0xff]
    %v1616 = vld [vmem:[%s8 + $0x548] sm:$0xff]
    %v1617 = vld [vmem:[%s8 + $0x550] sm:$0xff]
    %v1618 = vld [vmem:[%s8 + $0x558] sm:$0xff]
    %v1619 = vld [vmem:[%s8 + $0x560] sm:$0xff]
    %v1620 = vld [vmem:[%s8 + $0x568] sm:$0xff]
    %v1621 = vld [vmem:[%s8 + $0x570] sm:$0xff]
    %v1622 = vld [vmem:[%s8 + $0x578] sm:$0xff]
    %v1623 = vld [vmem:[%s8 + $0x580] sm:$0xff]
    %v1624 = vld [vmem:[%s8 + $0x588] sm:$0xff]
    %v1625 = vld [vmem:[%s8 + $0x590] sm:$0xff]
    %v1626 = vld [vmem:[%s8 + $0x598] sm:$0xff]
    %v1627 = vld [vmem:[%s8 + $0x5a0] sm:$0xff]
    %v1628 = vld [vmem:[%s8 + $0x5a8] sm:$0xff]
    %v1629 = vld [vmem:[%s8 + $0x5b0] sm:$0xff]
    %v1630 = vld [vmem:[%s8 + $0x5b8] sm:$0xff]
    %v1631 = vld [vmem:[%s8 + $0x5c0] sm:$0xff]
    %v1632 = vld [vmem:[%s8 + $0x5c8] sm:$0xff]
    %v1633 = vld [vmem:[%s8 + $0x5d0] sm:$0xff]
    %v1634 = vld [vmem:[%s8 + $0x5d8] sm:$0xff]
    %v1635 = vld [vmem:[%s8 + $0x5e0] sm:$0xff]
    %v1636 = vld [vmem:[%s8 + $0x5e8] sm:$0xff]
    %v1637 = vld [vmem:[%s8 + $0x5f0] sm:$0xff]
    %v1638 = vld [vmem:[%s8 + $0x5f8] sm:$0xff]
    %v1639 = vld [vmem:[%s8 + $0x600] sm:$0xff]
    %v1640 = vld [vmem:[%s8 + $0x608] sm:$0xff]
    %v1641 = vld [vmem:[%s8 + $0x610] sm:$0xff]
    %v1642 = vld [vmem:[%s8 + $0x618] sm:$0xff]
    %v1643 = vld [vmem:[%s8 + $0x620] sm:$0xff]
    %v1644 = vld [vmem:[%s8 + $0x628] sm:$0xff]
    %v1645 = vld [vmem:[%s8 + $0x630] sm:$0xff]
    %v1646 = vld [vmem:[%s8 + $0x638] sm:$0xff]
    %v1647 = vld [vmem:[%s8 + $0x640] sm:$0xff]
    %v1648 = vld [vmem:[%s8 + $0x648] sm:$0xff]
    %v1649 = vld [vmem:[%s8 + $0x650] sm:$0xff]
    %v1650 = vld [vmem:[%s8 + $0x658] sm:$0xff]
    %v1651 = vld [vmem:[%s8 + $0x660] sm:$0xff]
    %v1652 = vld [vmem:[%s8 + $0x668] sm:$0xff]
    %v1653 = vld [vmem:[%s8 + $0x670] sm:$0xff]
    %v1654 = vld [vmem:[%s8 + $0x678] sm:$0xff]
    %v1655 = vld [vmem:[%s8 + $0x680] sm:$0xff]
    %v1656 = vld [vmem:[%s8 + $0x688] sm:$0xff]
    %v1657 = vld [vmem:[%s8 + $0x690] sm:$0xff]
    %v1658 = vld [vmem:[%s8 + $0x698] sm:$0xff]
    %v1659 = vld [vmem:[%s8 + $0x6a0] sm:$0xff]
    %v1660 = vld [vmem:[%s8 + $0x6a8] sm:$0xff]
    %v1661 = vld [vmem:[%s8 + $0x6b0] sm:$0xff]
    %v1662 = vld [vmem:[%s8 + $0x6b8] sm:$0xff]
    %v1663 = vld [vmem:[%s8 + $0x6c0] sm:$0xff]
    %v1664 = vld [vmem:[%s8 + $0x6c8] sm:$0xff]
    %v1665 = vld [vmem:[%s8 + $0x6d0] sm:$0xff]
    %v1666 = vld [vmem:[%s8 + $0x6d8] sm:$0xff]
    %v1667 = vld [vmem:[%s8 + $0x6e0] sm:$0xff]
    %v1668 = vld [vmem:[%s8 + $0x6e8] sm:$0xff]
    %v1669 = vld [vmem:[%s8 + $0x6f0] sm:$0xff]
    %v1670 = vld [vmem:[%s8 + $0x6f8] sm:$0xff]
    %v1671 = vld [vmem:[%s8 + $0x700] sm:$0xff]
    %v1672 = vld [vmem:[%s8 + $0x708] sm:$0xff]
    %v1673 = vld [vmem:[%s8 + $0x710] sm:$0xff]
    %v1674 = vld [vmem:[%s8 + $0x718] sm:$0xff]
    %v1675 = vld [vmem:[%s8 + $0x720] sm:$0xff]
    %v1676 = vld [vmem:[%s8 + $0x728] sm:$0xff]
    %v1677 = vld [vmem:[%s8 + $0x730] sm:$0xff]
    %v1678 = vld [vmem:[%s8 + $0x738] sm:$0xff]
    %v1679 = vld [vmem:[%s8 + $0x740] sm:$0xff]
    %v1680 = vld [vmem:[%s8 + $0x748] sm:$0xff]
    %v1681 = vld [vmem:[%s8 + $0x750] sm:$0xff]
    %v1682 = vld [vmem:[%s8 + $0x758] sm:$0xff]
    %v1683 = vld [vmem:[%s8 + $0x760] sm:$0xff]
    %v1684 = vld [vmem:[%s8 + $0x768] sm:$0xff]
    %v1685 = vld [vmem:[%s8 + $0x770] sm:$0xff]
    %v1686 = vld [vmem:[%s8 + $0x778] sm:$0xff]
    %v1687 = vld [vmem:[%s8 + $0x780] sm:$0xff]
    %v1688 = vld [vmem:[%s8 + $0x788] sm:$0xff]
    %v1689 = vld [vmem:[%s8 + $0x790] sm:$0xff]
    %v1690 = vld [vmem:[%s8 + $0x798] sm:$0xff]
    %v1691 = vld [vmem:[%s8 + $0x7a0] sm:$0xff]
    %v1692 = vld [vmem:[%s8 + $0x7a8] sm:$0xff]
    %v1693 = vld [vmem:[%s8 + $0x7b0] sm:$0xff]
    %v1694 = vld [vmem:[%s8 + $0x7b8] sm:$0xff]
    %v1695 = vld [vmem:[%s8 + $0x7c0] sm:$0xff]
    %v1696 = vld [vmem:[%s8 + $0x7c8] sm:$0xff]
    %v1697 = vld [vmem:[%s8 + $0x7d0] sm:$0xff]
    %v1698 = vld [vmem:[%s8 + $0x7d8] sm:$0xff]
    %v1699 = vld [vmem:[%s8 + $0x7e0] sm:$0xff]
    %v1700 = vld [vmem:[%s8 + $0x7e8] sm:$0xff]
    %v1701 = vld [vmem:[%s8 + $0x7f0] sm:$0xff]
    %v1702 = vld [vmem:[%s8 + $0x7f8] sm:$0xff]
    %v1703 = vld [vmem:[%s8 + $0x800] sm:$0xff]
    %v1704 = vld [vmem:[%s8 + $0x808] sm:$0xff]
    %v1705 = vld [vmem:[%s8 + $0x810] sm:$0xff]
    %v1706 = vld [vmem:[%s8 + $0x818] sm:$0xff]
    %v1707 = vld [vmem:[%s8 + $0x820] sm:$0xff]
    %v1708 = vld [vmem:[%s8 + $0x828] sm:$0xff]
    %v1709 = vld [vmem:[%s8 + $0x830] sm:$0xff]
    %v1710 = vld [vmem:[%s8 + $0x838] sm:$0xff]
    %v1711 = vld [vmem:[%s8 + $0x840] sm:$0xff]
    %v1712 = vld [vmem:[%s8 + $0x848] sm:$0xff]
    %v1713 = vld [vmem:[%s8 + $0x850] sm:$0xff]
    %v1714 = vld [vmem:[%s8 + $0x858] sm:$0xff]
    %v1715 = vld [vmem:[%s8 + $0x860] sm:$0xff]
    %v1716 = vld [vmem:[%s8 + $0x868] sm:$0xff]
    %v1717 = vld [vmem:[%s8 + $0x870] sm:$0xff]
    %v1718 = vld [vmem:[%s8 + $0x878] sm:$0xff]
    %v1719 = vld [vmem:[%s8 + $0x880] sm:$0xff]
    %v1720 = vld [vmem:[%s8 + $0x888] sm:$0xff]
    %v1721 = vld [vmem:[%s8 + $0x890] sm:$0xff]
    %v1722 = vld [vmem:[%s8 + $0x898] sm:$0xff]
    %v1723 = vld [vmem:[%s8 + $0x8a0] sm:$0xff]
    %v1724 = vld [vmem:[%s8 + $0x8a8] sm:$0xff]
    %v1725 = vld [vmem:[%s8 + $0x8b0] sm:$0xff]
    %v1726 = vld [vmem:[%s8 + $0x8b8] sm:$0xff]
    %v1727 = vld [vmem:[%s8 + $0x8c0] sm:$0xff]
    %v1728 = vld [vmem:[%s8 + $0x8c8] sm:$0xff]
    %v1729 = vld [vmem:[%s8 + $0x8d0] sm:$0xff]
    %v1730 = vld [vmem:[%s8 + $0x8d8] sm:$0xff]
    %v1731 = vld [vmem:[%s8 + $0x8e0] sm:$0xff]
    %v1732 = vld [vmem:[%s8 + $0x8e8] sm:$0xff]
    %v1733 = vld [vmem:[%s8 + $0x8f0] sm:$0xff]
    %v1734 = vld [vmem:[%s8 + $0x8f8] sm:$0xff]
    %v1735 = vld [vmem:[%s8 + $0x900] sm:$0xff]
    %v1736 = vld [vmem:[%s8 + $0x908] sm:$0xff]
    %v1737 = vld [vmem:[%s8 + $0x910] sm:$0xff]
    %v1738 = vld [vmem:[%s8 + $0x918] sm:$0xff]
    %v1739 = vld [vmem:[%s8 + $0x920] sm:$0xff]
    %v1740 = vld [vmem:[%s8 + $0x928] sm:$0xff]
    %v1741 = vld [vmem:[%s8 + $0x930] sm:$0xff]
    %v1742 = vld [vmem:[%s8 + $0x938] sm:$0xff]
    %v1743 = vld [vmem:[%s8 + $0x940] sm:$0xff]
    %v1744 = vld [vmem:[%s8 + $0x948] sm:$0xff]
    %v1745 = vld [vmem:[%s8 + $0x950] sm:$0xff]
    %v1746 = vld [vmem:[%s8 + $0x958] sm:$0xff]
    %v1747 = vld [vmem:[%s8 + $0x960] sm:$0xff]
    %v1748 = vld [vmem:[%s8 + $0x968] sm:$0xff]
    %v1749 = vld [vmem:[%s8 + $0x970] sm:$0xff]
    %v1750 = vld [vmem:[%s8 + $0x978] sm:$0xff]
    %v1751 = vld [vmem:[%s8 + $0x980] sm:$0xff]
    %v1752 = vld [vmem:[%s8 + $0x988] sm:$0xff]
    %v1753 = vld [vmem:[%s8 + $0x990] sm:$0xff]
    %v1754 = vld [vmem:[%s8 + $0x998] sm:$0xff]
    %v1755 = vld [vmem:[%s8 + $0x9a0] sm:$0xff]
    %v1756 = vld [vmem:[%s8 + $0x9a8] sm:$0xff]
    %v1757 = vld [vmem:[%s8 + $0x9b0] sm:$0xff]
    %v1758 = vld [vmem:[%s8 + $0x9b8] sm:$0xff]
    %v1759 = vld [vmem:[%s8 + $0x9c0] sm:$0xff]
    %v1760 = vld [vmem:[%s8 + $0x9c8] sm:$0xff]
    %v1761 = vld [vmem:[%s8 + $0x9d0] sm:$0xff]
    %v1762 = vld [vmem:[%s8 + $0x9d8] sm:$0xff]
    %v1763 = vld [vmem:[%s8 + $0x9e0] sm:$0xff]
    %v1764 = vld [vmem:[%s8 + $0x9e8] sm:$0xff]
    %v1765 = vld [vmem:[%s8 + $0x9f0] sm:$0xff]
    %v1766 = vld [vmem:[%s8 + $0x9f8] sm:$0xff]
    %v1767 = vld [vmem:[%s8 + $0xa00] sm:$0xff]
    %v1768 = vld [vmem:[%s8 + $0xa08] sm:$0xff]
    %v1769 = vld [vmem:[%s8 + $0xa10] sm:$0xff]
    %v1770 = vld [vmem:[%s8 + $0xa18] sm:$0xff]
    %v1771 = vld [vmem:[%s8 + $0xa20] sm:$0xff]
    %v1772 = vld [vmem:[%s8 + $0xa28] sm:$0xff]
    %v1773 = vld [vmem:[%s8 + $0xa30] sm:$0xff]
    %v1774 = vld [vmem:[%s8 + $0xa38] sm:$0xff]
    %v1775 = vld [vmem:[%s8 + $0xa40] sm:$0xff]
    %v1776 = vld [vmem:[%s8 + $0xa48] sm:$0xff]
    %v1777 = vld [vmem:[%s8 + $0xa50] sm:$0xff]
    %v1778 = vld [vmem:[%s8 + $0xa58] sm:$0xff]
    %v1779 = vld [vmem:[%s8 + $0xa60] sm:$0xff]
    %v1780 = vld [vmem:[%s8 + $0xa68] sm:$0xff]
    %v1781 = vld [vmem:[%s8 + $0xa70] sm:$0xff]
    %v1782 = vld [vmem:[%s8 + $0xa78] sm:$0xff]
    %v1783 = vld [vmem:[%s8 + $0xa80] sm:$0xff]
    %v1784 = vld [vmem:[%s8 + $0xa88] sm:$0xff]
    %v1785 = vld [vmem:[%s8 + $0xa90] sm:$0xff]
    %v1786 = vld [vmem:[%s8 + $0xa98] sm:$0xff]
    %v1787 = vld [vmem:[%s8 + $0xaa0] sm:$0xff]
    %v1788 = vld [vmem:[%s8 + $0xaa8] sm:$0xff]
    %v1789 = vld [vmem:[%s8 + $0xab0] sm:$0xff]
    %v1790 = vld [vmem:[%s8 + $0xab8] sm:$0xff]
    %v1791 = vld [vmem:[%s8 + $0xac0] sm:$0xff]
    %v1792 = vld [vmem:[%s8 + $0xac8] sm:$0xff]
    %v1793 = vld [vmem:[%s8 + $0xad0] sm:$0xff]
    %v1794 = vld [vmem:[%s8 + $0xad8] sm:$0xff]
    %v1795 = vld [vmem:[%s8 + $0xae0] sm:$0xff]
    %v1796 = vld [vmem:[%s8 + $0xae8] sm:$0xff]
    %v1797 = vld [vmem:[%s9] sm:$0x7f]
    %v1799 = vlaneseq
    %v1800 = vshrl.u32 %v1799, 7
    %v1801 = vsub.s32 0, %v1800
    %v1802 = vrot.slane %v1797, %v1801
    %v1803 = vlaneseq
    %v1804 = vshrl.u32 %v1803, 7
    %v1805 = vsub.s32 1, %v1804
    %v1806 = vrot.slane %v1797, %v1805
    %v1807 = vlaneseq
    %v1808 = vshrl.u32 %v1807, 7
    %v1809 = vsub.s32 2, %v1808
    %v1810 = vrot.slane %v1797, %v1809
    %v1811 = vlaneseq
    %v1812 = vshrl.u32 %v1811, 7
    %v1813 = vsub.s32 3, %v1812
    %v1814 = vrot.slane %v1797, %v1813
    %v1815 = vlaneseq
    %v1816 = vshrl.u32 %v1815, 7
    %v1817 = vsub.s32 4, %v1816
    %v1818 = vrot.slane %v1797, %v1817
    %v1819 = vlaneseq
    %v1820 = vshrl.u32 %v1819, 7
    %v1821 = vsub.s32 5, %v1820
    %v1822 = vrot.slane %v1797, %v1821
    %v1823 = vlaneseq
    %v1824 = vshrl.u32 %v1823, 7
    %v1825 = vsub.s32 6, %v1824
    %v1826 = vrot.slane %v1797, %v1825
    %v1835 = vsel %vm459, %v1446, 0
    %1837 = vmatprep.subr.mxu0 %v1448
    %1838 = vmatpush1.msra.mxu0 %v1447
    %1839 = vmatprep.subr.mxu0 %v1455
    %1840 = vmatpush1.msra.mxu0 %v1454
    %1841 = vmatprep.subr.mxu0 %v1462
    %1842 = vmatpush1.msra.mxu0 %v1461
    %1843 = vmatprep.subr.mxu0 %v1469
    %1844 = vmatpush1.msra.mxu0 %v1468
    %1845 = vmatprep.subr.mxu0 %v1476
    %1846 = vmatpush1.msra.mxu0 %v1475
    %1847 = vmatprep.subr.mxu0 %v1483
    %1848 = vmatpush1.msra.mxu0 %v1482
    %1849 = vmatprep.subr.mxu0 %v1490
    %1850 = vmatpush1.msra.mxu0 %v1489
    %1851 = vmatprep.subr.mxu0 %v1497
    %1852 = vmatpush1.msra.mxu0 %v1496
    %1853 = vmatprep.subr.mxu0 %v1504
    %1854 = vmatpush1.msra.mxu0 %v1503
    %1855 = vmatprep.subr.mxu0 %v1511
    %1856 = vmatpush1.msra.mxu0 %v1510
    %1857 = vmatprep.subr.mxu0 %v1518
    %1858 = vmatpush1.msra.mxu0 %v1517
    %1859 = vmatprep.subr.mxu0 %v1525
    %1860 = vmatpush1.msra.mxu0 %v1524
    %1861 = vmatprep.subr.mxu0 %v1532
    %1862 = vmatpush1.msra.mxu0 %v1531
    %1863 = vmatprep.subr.mxu0 %v1539
    %1864 = vmatpush1.msra.mxu0 %v1538
    %1865 = vmatprep.subr.mxu0 %v1546
    %1866 = vmatpush1.msra.mxu0 %v1545
    %1867 = vmatprep.subr.mxu0 %v1553
    %1868 = vmatpush1.msra.mxu0 %v1552
    %1869 = vmatprep.subr.mxu0 %v1560
    %1870 = vmatpush1.msra.mxu0 %v1559
    %1871 = vmatprep.subr.mxu0 %v1567
    %1872 = vmatpush1.msra.mxu0 %v1566
    %1873 = vmatprep.subr.mxu0 %v1574
    %1874 = vmatpush1.msra.mxu0 %v1573
    %1875 = vmatprep.subr.mxu0 %v1581
    %1876 = vmatpush1.msra.mxu0 %v1580
    %1877 = vmatprep.subr.mxu0 %v1588
    %1878 = vmatpush1.msra.mxu0 %v1587
    %1879 = vmatprep.subr.mxu0 %v1595
    %1880 = vmatpush1.msra.mxu0 %v1594
    %1881 = vmatprep.subr.mxu0 %v1602
    %1882 = vmatpush1.msra.mxu0 %v1601
    %1883 = vmatprep.subr.mxu0 %v1609
    %1884 = vmatpush1.msra.mxu0 %v1608
    %1885 = vmatprep.subr.mxu0 %v1616
    %1886 = vmatpush1.msra.mxu0 %v1615
    %1887 = vmatprep.subr.mxu0 %v1623
    %1888 = vmatpush1.msra.mxu0 %v1622
    %1889 = vmatprep.subr.mxu0 %v1630
    %1890 = vmatpush1.msra.mxu0 %v1629
    %1891 = vmatprep.subr.mxu0 %v1637
    %1892 = vmatpush1.msra.mxu0 %v1636
    %1893 = vmatprep.subr.mxu0 %v1644
    %1894 = vmatpush1.msra.mxu0 %v1643
    %1895 = vmatprep.subr.mxu0 %v1651
    %1896 = vmatpush1.msra.mxu0 %v1650
    %1897 = vmatprep.subr.mxu0 %v1658
    %1898 = vmatpush1.msra.mxu0 %v1657
    %1899 = vmatprep.subr.mxu0 %v1665
    %1900 = vmatpush1.msra.mxu0 %v1664
    %1901 = vmatprep.mubr.f32.mxu0 %v1444
    %1902 = vmatmul.mubr.f32.gmra.mrb[0].mxu0 %v1443
    %v1903 = vpop.f32.mrb[0].mxu0
    %v1904 = vadd.f32 %v1802, %v1903
    %v1905 = vpop.f32.mrb[0].mxu0
    %v1906 = vadd.f32 %v1806, %v1905
    %1907 = vdwg.mxu0
    %1908 = vmatprep.subr.mxu0 %v1672
    %1909 = vmatpush1.msra.mxu0 %v1671
    %1910 = vmatprep.subr.mxu0 %v1679
    %1911 = vmatpush1.msra.mxu0 %v1678
    %1912 = vmatprep.subr.mxu0 %v1686
    %1913 = vmatpush1.msra.mxu0 %v1685
    %1914 = vmatprep.subr.mxu0 %v1693
    %1915 = vmatpush1.msra.mxu0 %v1692
    %1916 = vmatprep.subr.mxu0 %v1700
    %1917 = vmatpush1.msra.mxu0 %v1699
    %1918 = vmatprep.subr.mxu0 %v1707
    %1919 = vmatpush1.msra.mxu0 %v1706
    %1920 = vmatprep.subr.mxu0 %v1714
    %1921 = vmatpush1.msra.mxu0 %v1713
    %1922 = vmatprep.subr.mxu0 %v1721
    %1923 = vmatpush1.msra.mxu0 %v1720
    %1924 = vmatprep.subr.mxu0 %v1728
    %1925 = vmatpush1.msra.mxu0 %v1727
    %1926 = vmatprep.subr.mxu0 %v1735
    %1927 = vmatpush1.msra.mxu0 %v1734
    %1928 = vmatprep.subr.mxu0 %v1742
    %1929 = vmatpush1.msra.mxu0 %v1741
    %1930 = vmatprep.subr.mxu0 %v1749
    %1931 = vmatpush1.msra.mxu0 %v1748
    %1932 = vmatprep.subr.mxu0 %v1756
    %1933 = vmatpush1.msra.mxu0 %v1755
    %1934 = vmatprep.subr.mxu0 %v1763
    %1935 = vmatpush1.msra.mxu0 %v1762
    %1936 = vmatprep.subr.mxu0 %v1770
    %1937 = vmatpush1.msra.mxu0 %v1769
    %1938 = vmatprep.subr.mxu0 %v1777
    %1939 = vmatpush1.msra.mxu0 %v1776
    %1940 = vmatprep.subr.mxu0 %v1784
    %1941 = vmatpush1.msra.mxu0 %v1783
    %1942 = vmatprep.subr.mxu0 %v1791
    %1943 = vmatpush1.msra.mxu0 %v1790
    %1944 = vmatprep.subr.mxu0 0.0
    %1945 = vmatpush1.msra.mxu0 0.0
    %1946 = vmatprep.subr.mxu0 0.0
    %1947 = vmatpush1.msra.mxu0 0.0
    %1948 = vmatprep.subr.mxu0 0.0
    %1949 = vmatpush1.msra.mxu0 0.0
    %1950 = vmatprep.subr.mxu0 0.0
    %1951 = vmatpush1.msra.mxu0 0.0
    %1952 = vmatprep.subr.mxu0 0.0
    %1953 = vmatpush1.msra.mxu0 0.0
    %1954 = vmatprep.subr.mxu0 0.0
    %1955 = vmatpush1.msra.mxu0 0.0
    %1956 = vmatprep.subr.mxu0 0.0
    %1957 = vmatpush1.msra.mxu0 0.0
    %1958 = vmatprep.subr.mxu0 0.0
    %1959 = vmatpush1.msra.mxu0 0.0
    %1960 = vmatprep.subr.mxu0 0.0
    %1961 = vmatpush1.msra.mxu0 0.0
    %1962 = vmatprep.subr.mxu0 0.0
    %1963 = vmatpush1.msra.mxu0 0.0
    %1964 = vmatprep.subr.mxu0 0.0
    %1965 = vmatpush1.msra.mxu0 0.0
    %1966 = vmatprep.subr.mxu0 0.0
    %1967 = vmatpush1.msra.mxu0 0.0
    %1968 = vmatprep.subr.mxu0 0.0
    %1969 = vmatpush1.msra.mxu0 0.0
    %1970 = vmatprep.subr.mxu0 0.0
    %1971 = vmatpush1.msra.mxu0 0.0
    %1972 = vmatprep.mubr.f32.mxu0 %v1835
    %1973 = vmatmul.mubr.f32.gmra.mrb[0].mxu0 %v1445
    %v1974 = vpop.f32.mrb[0].mxu0
    %v1975 = vadd.f32 %v1904, %v1974
    %v1976 = vpop.f32.mrb[0].mxu0
    %v1977 = vadd.f32 %v1906, %v1976
    %1978 = vdwg.mxu0
    %1979 = vmatprep.subr.mxu0 %v1450
    %1980 = vmatpush1.msra.mxu0 %v1449
    %1981 = vmatprep.subr.mxu0 %v1457
    %1982 = vmatpush1.msra.mxu0 %v1456
    %1983 = vmatprep.subr.mxu0 %v1464
    %1984 = vmatpush1.msra.mxu0 %v1463
    %1985 = vmatprep.subr.mxu0 %v1471
    %1986 = vmatpush1.msra.mxu0 %v1470
    %1987 = vmatprep.subr.mxu0 %v1478
    %1988 = vmatpush1.msra.mxu0 %v1477
    %1989 = vmatprep.subr.mxu0 %v1485
    %1990 = vmatpush1.msra.mxu0 %v1484
    %1991 = vmatprep.subr.mxu0 %v1492
    %1992 = vmatpush1.msra.mxu0 %v1491
    %1993 = vmatprep.subr.mxu0 %v1499
    %1994 = vmatpush1.msra.mxu0 %v1498
    %1995 = vmatprep.subr.mxu0 %v1506
    %1996 = vmatpush1.msra.mxu0 %v1505
    %1997 = vmatprep.subr.mxu0 %v1513
    %1998 = vmatpush1.msra.mxu0 %v1512
    %1999 = vmatprep.subr.mxu0 %v1520
    %2000 = vmatpush1.msra.mxu0 %v1519
    %2001 = vmatprep.subr.mxu0 %v1527
    %2002 = vmatpush1.msra.mxu0 %v1526
    %2003 = vmatprep.subr.mxu0 %v1534
    %2004 = vmatpush1.msra.mxu0 %v1533
    %2005 = vmatprep.subr.mxu0 %v1541
    %2006 = vmatpush1.msra.mxu0 %v1540
    %2007 = vmatprep.subr.mxu0 %v1548
    %2008 = vmatpush1.msra.mxu0 %v1547
    %2009 = vmatprep.subr.mxu0 %v1555
    %2010 = vmatpush1.msra.mxu0 %v1554
    %2011 = vmatprep.subr.mxu0 %v1562
    %2012 = vmatpush1.msra.mxu0 %v1561
    %2013 = vmatprep.subr.mxu0 %v1569
    %2014 = vmatpush1.msra.mxu0 %v1568
    %2015 = vmatprep.subr.mxu0 %v1576
    %2016 = vmatpush1.msra.mxu0 %v1575
    %2017 = vmatprep.subr.mxu0 %v1583
    %2018 = vmatpush1.msra.mxu0 %v1582
    %2019 = vmatprep.subr.mxu0 %v1590
    %2020 = vmatpush1.msra.mxu0 %v1589
    %2021 = vmatprep.subr.mxu0 %v1597
    %2022 = vmatpush1.msra.mxu0 %v1596
    %2023 = vmatprep.subr.mxu0 %v1604
    %2024 = vmatpush1.msra.mxu0 %v1603
    %2025 = vmatprep.subr.mxu0 %v1611
    %2026 = vmatpush1.msra.mxu0 %v1610
    %2027 = vmatprep.subr.mxu0 %v1618
    %2028 = vmatpush1.msra.mxu0 %v1617
    %2029 = vmatprep.subr.mxu0 %v1625
    %2030 = vmatpush1.msra.mxu0 %v1624
    %2031 = vmatprep.subr.mxu0 %v1632
    %2032 = vmatpush1.msra.mxu0 %v1631
    %2033 = vmatprep.subr.mxu0 %v1639
    %2034 = vmatpush1.msra.mxu0 %v1638
    %2035 = vmatprep.subr.mxu0 %v1646
    %2036 = vmatpush1.msra.mxu0 %v1645
    %2037 = vmatprep.subr.mxu0 %v1653
    %2038 = vmatpush1.msra.mxu0 %v1652
    %2039 = vmatprep.subr.mxu0 %v1660
    %2040 = vmatpush1.msra.mxu0 %v1659
    %2041 = vmatprep.subr.mxu0 %v1667
    %2042 = vmatpush1.msra.mxu0 %v1666
    %2043 = vmatprep.mubr.f32.mxu0 %v1444
    %2044 = vmatmul.mubr.f32.gmra.mrb[0].mxu0 %v1443
    %v2045 = vpop.f32.mrb[0].mxu0
    %v2046 = vadd.f32 %v1810, %v2045
    %v2047 = vpop.f32.mrb[0].mxu0
    %v2048 = vadd.f32 %v1814, %v2047
    %2049 = vdwg.mxu0
    %2050 = vmatprep.subr.mxu0 %v1674
    %2051 = vmatpush1.msra.mxu0 %v1673
    %2052 = vmatprep.subr.mxu0 %v1681
    %2053 = vmatpush1.msra.mxu0 %v1680
    %2054 = vmatprep.subr.mxu0 %v1688
    %2055 = vmatpush1.msra.mxu0 %v1687
    %2056 = vmatprep.subr.mxu0 %v1695
    %2057 = vmatpush1.msra.mxu0 %v1694
    %2058 = vmatprep.subr.mxu0 %v1702
    %2059 = vmatpush1.msra.mxu0 %v1701
    %2060 = vmatprep.subr.mxu0 %v1709
    %2061 = vmatpush1.msra.mxu0 %v1708
    %2062 = vmatprep.subr.mxu0 %v1716
    %2063 = vmatpush1.msra.mxu0 %v1715
    %2064 = vmatprep.subr.mxu0 %v1723
    %2065 = vmatpush1.msra.mxu0 %v1722
    %2066 = vmatprep.subr.mxu0 %v1730
    %2067 = vmatpush1.msra.mxu0 %v1729
    %2068 = vmatprep.subr.mxu0 %v1737
    %2069 = vmatpush1.msra.mxu0 %v1736
    %2070 = vmatprep.subr.mxu0 %v1744
    %2071 = vmatpush1.msra.mxu0 %v1743
    %2072 = vmatprep.subr.mxu0 %v1751
    %2073 = vmatpush1.msra.mxu0 %v1750
    %2074 = vmatprep.subr.mxu0 %v1758
    %2075 = vmatpush1.msra.mxu0 %v1757
    %2076 = vmatprep.subr.mxu0 %v1765
    %2077 = vmatpush1.msra.mxu0 %v1764
    %2078 = vmatprep.subr.mxu0 %v1772
    %2079 = vmatpush1.msra.mxu0 %v1771
    %2080 = vmatprep.subr.mxu0 %v1779
    %2081 = vmatpush1.msra.mxu0 %v1778
    %2082 = vmatprep.subr.mxu0 %v1786
    %2083 = vmatpush1.msra.mxu0 %v1785
    %2084 = vmatprep.subr.mxu0 %v1793
    %2085 = vmatpush1.msra.mxu0 %v1792
    %2086 = vmatprep.subr.mxu0 0.0
    %2087 = vmatpush1.msra.mxu0 0.0
    %2088 = vmatprep.subr.mxu0 0.0
    %2089 = vmatpush1.msra.mxu0 0.0
    %2090 = vmatprep.subr.mxu0 0.0
    %2091 = vmatpush1.msra.mxu0 0.0
    %2092 = vmatprep.subr.mxu0 0.0
    %2093 = vmatpush1.msra.mxu0 0.0
    %2094 = vmatprep.subr.mxu0 0.0
    %2095 = vmatpush1.msra.mxu0 0.0
    %2096 = vmatprep.subr.mxu0 0.0
    %2097 = vmatpush1.msra.mxu0 0.0
    %2098 = vmatprep.subr.mxu0 0.0
    %2099 = vmatpush1.msra.mxu0 0.0
    %2100 = vmatprep.subr.mxu0 0.0
    %2101 = vmatpush1.msra.mxu0 0.0
    %2102 = vmatprep.subr.mxu0 0.0
    %2103 = vmatpush1.msra.mxu0 0.0
    %2104 = vmatprep.subr.mxu0 0.0
    %2105 = vmatpush1.msra.mxu0 0.0
    %2106 = vmatprep.subr.mxu0 0.0
    %2107 = vmatpush1.msra.mxu0 0.0
    %2108 = vmatprep.subr.mxu0 0.0
    %2109 = vmatpush1.msra.mxu0 0.0
    %2110 = vmatprep.subr.mxu0 0.0
    %2111 = vmatpush1.msra.mxu0 0.0
    %2112 = vmatprep.subr.mxu0 0.0
    %2113 = vmatpush1.msra.mxu0 0.0
    %2114 = vmatprep.mubr.f32.mxu0 %v1835
    %2115 = vmatmul.mubr.f32.gmra.mrb[0].mxu0 %v1445
    %v2116 = vpop.f32.mrb[0].mxu0
    %v2117 = vadd.f32 %v2046, %v2116
    %v2118 = vpop.f32.mrb[0].mxu0
    %v2119 = vadd.f32 %v2048, %v2118
    %2120 = vdwg.mxu0
    %2121 = vmatprep.subr.mxu0 %v1452
    %2122 = vmatpush1.msra.mxu0 %v1451
    %2123 = vmatprep.subr.mxu0 %v1459
    %2124 = vmatpush1.msra.mxu0 %v1458
    %2125 = vmatprep.subr.mxu0 %v1466
    %2126 = vmatpush1.msra.mxu0 %v1465
    %2127 = vmatprep.subr.mxu0 %v1473
    %2128 = vmatpush1.msra.mxu0 %v1472
    %2129 = vmatprep.subr.mxu0 %v1480
    %2130 = vmatpush1.msra.mxu0 %v1479
    %2131 = vmatprep.subr.mxu0 %v1487
    %2132 = vmatpush1.msra.mxu0 %v1486
    %2133 = vmatprep.subr.mxu0 %v1494
    %2134 = vmatpush1.msra.mxu0 %v1493
    %2135 = vmatprep.subr.mxu0 %v1501
    %2136 = vmatpush1.msra.mxu0 %v1500
    %2137 = vmatprep.subr.mxu0 %v1508
    %2138 = vmatpush1.msra.mxu0 %v1507
    %2139 = vmatprep.subr.mxu0 %v1515
    %2140 = vmatpush1.msra.mxu0 %v1514
    %2141 = vmatprep.subr.mxu0 %v1522
    %2142 = vmatpush1.msra.mxu0 %v1521
    %2143 = vmatprep.subr.mxu0 %v1529
    %2144 = vmatpush1.msra.mxu0 %v1528
    %2145 = vmatprep.subr.mxu0 %v1536
    %2146 = vmatpush1.msra.mxu0 %v1535
    %2147 = vmatprep.subr.mxu0 %v1543
    %2148 = vmatpush1.msra.mxu0 %v1542
    %2149 = vmatprep.subr.mxu0 %v1550
    %2150 = vmatpush1.msra.mxu0 %v1549
    %2151 = vmatprep.subr.mxu0 %v1557
    %2152 = vmatpush1.msra.mxu0 %v1556
    %2153 = vmatprep.subr.mxu0 %v1564
    %2154 = vmatpush1.msra.mxu0 %v1563
    %2155 = vmatprep.subr.mxu0 %v1571
    %2156 = vmatpush1.msra.mxu0 %v1570
    %2157 = vmatprep.subr.mxu0 %v1578
    %2158 = vmatpush1.msra.mxu0 %v1577
    %2159 = vmatprep.subr.mxu0 %v1585
    %2160 = vmatpush1.msra.mxu0 %v1584
    %2161 = vmatprep.subr.mxu0 %v1592
    %2162 = vmatpush1.msra.mxu0 %v1591
    %2163 = vmatprep.subr.mxu0 %v1599
    %2164 = vmatpush1.msra.mxu0 %v1598
    %2165 = vmatprep.subr.mxu0 %v1606
    %2166 = vmatpush1.msra.mxu0 %v1605
    %2167 = vmatprep.subr.mxu0 %v1613
    %2168 = vmatpush1.msra.mxu0 %v1612
    %2169 = vmatprep.subr.mxu0 %v1620
    %2170 = vmatpush1.msra.mxu0 %v1619
    %2171 = vmatprep.subr.mxu0 %v1627
    %2172 = vmatpush1.msra.mxu0 %v1626
    %2173 = vmatprep.subr.mxu0 %v1634
    %2174 = vmatpush1.msra.mxu0 %v1633
    %2175 = vmatprep.subr.mxu0 %v1641
    %2176 = vmatpush1.msra.mxu0 %v1640
    %2177 = vmatprep.subr.mxu0 %v1648
    %2178 = vmatpush1.msra.mxu0 %v1647
    %2179 = vmatprep.subr.mxu0 %v1655
    %2180 = vmatpush1.msra.mxu0 %v1654
    %2181 = vmatprep.subr.mxu0 %v1662
    %2182 = vmatpush1.msra.mxu0 %v1661
    %2183 = vmatprep.subr.mxu0 %v1669
    %2184 = vmatpush1.msra.mxu0 %v1668
    %2185 = vmatprep.mubr.f32.mxu0 %v1444
    %2186 = vmatmul.mubr.f32.gmra.mrb[0].mxu0 %v1443
    %v2187 = vpop.f32.mrb[0].mxu0
    %v2188 = vadd.f32 %v1818, %v2187
    %v2189 = vpop.f32.mrb[0].mxu0
    %v2190 = vadd.f32 %v1822, %v2189
    %2191 = vdwg.mxu0
    %2192 = vmatprep.subr.mxu0 %v1676
    %2193 = vmatpush1.msra.mxu0 %v1675
    %2194 = vmatprep.subr.mxu0 %v1683
    %2195 = vmatpush1.msra.mxu0 %v1682
    %2196 = vmatprep.subr.mxu0 %v1690
    %2197 = vmatpush1.msra.mxu0 %v1689
    %2198 = vmatprep.subr.mxu0 %v1697
    %2199 = vmatpush1.msra.mxu0 %v1696
    %2200 = vmatprep.subr.mxu0 %v1704
    %2201 = vmatpush1.msra.mxu0 %v1703
    %2202 = vmatprep.subr.mxu0 %v1711
    %2203 = vmatpush1.msra.mxu0 %v1710
    %2204 = vmatprep.subr.mxu0 %v1718
    %2205 = vmatpush1.msra.mxu0 %v1717
    %2206 = vmatprep.subr.mxu0 %v1725
    %2207 = vmatpush1.msra.mxu0 %v1724
    %2208 = vmatprep.subr.mxu0 %v1732
    %2209 = vmatpush1.msra.mxu0 %v1731
    %2210 = vmatprep.subr.mxu0 %v1739
    %2211 = vmatpush1.msra.mxu0 %v1738
    %2212 = vmatprep.subr.mxu0 %v1746
    %2213 = vmatpush1.msra.mxu0 %v1745
    %2214 = vmatprep.subr.mxu0 %v1753
    %2215 = vmatpush1.msra.mxu0 %v1752
    %2216 = vmatprep.subr.mxu0 %v1760
    %2217 = vmatpush1.msra.mxu0 %v1759
    %2218 = vmatprep.subr.mxu0 %v1767
    %2219 = vmatpush1.msra.mxu0 %v1766
    %2220 = vmatprep.subr.mxu0 %v1774
    %2221 = vmatpush1.msra.mxu0 %v1773
    %2222 = vmatprep.subr.mxu0 %v1781
    %2223 = vmatpush1.msra.mxu0 %v1780
    %2224 = vmatprep.subr.mxu0 %v1788
    %2225 = vmatpush1.msra.mxu0 %v1787
    %2226 = vmatprep.subr.mxu0 %v1795
    %2227 = vmatpush1.msra.mxu0 %v1794
    %2228 = vmatprep.subr.mxu0 0.0
    %2229 = vmatpush1.msra.mxu0 0.0
    %2230 = vmatprep.subr.mxu0 0.0
    %2231 = vmatpush1.msra.mxu0 0.0
    %2232 = vmatprep.subr.mxu0 0.0
    %2233 = vmatpush1.msra.mxu0 0.0
    %2234 = vmatprep.subr.mxu0 0.0
    %2235 = vmatpush1.msra.mxu0 0.0
    %2236 = vmatprep.subr.mxu0 0.0
    %2237 = vmatpush1.msra.mxu0 0.0
    %2238 = vmatprep.subr.mxu0 0.0
    %2239 = vmatpush1.msra.mxu0 0.0
    %2240 = vmatprep.subr.mxu0 0.0
    %2241 = vmatpush1.msra.mxu0 0.0
    %2242 = vmatprep.subr.mxu0 0.0
    %2243 = vmatpush1.msra.mxu0 0.0
    %2244 = vmatprep.subr.mxu0 0.0
    %2245 = vmatpush1.msra.mxu0 0.0
    %2246 = vmatprep.subr.mxu0 0.0
    %2247 = vmatpush1.msra.mxu0 0.0
    %2248 = vmatprep.subr.mxu0 0.0
    %2249 = vmatpush1.msra.mxu0 0.0
    %2250 = vmatprep.subr.mxu0 0.0
    %2251 = vmatpush1.msra.mxu0 0.0
    %2252 = vmatprep.subr.mxu0 0.0
    %2253 = vmatpush1.msra.mxu0 0.0
    %2254 = vmatprep.subr.mxu0 0.0
    %2255 = vmatpush1.msra.mxu0 0.0
    %2256 = vmatprep.mubr.f32.mxu0 %v1835
    %2257 = vmatmul.mubr.f32.gmra.mrb[0].mxu0 %v1445
    %v2258 = vpop.f32.mrb[0].mxu0
    %v2259 = vadd.f32 %v2188, %v2258
    %v2260 = vpop.f32.mrb[0].mxu0
    %v2261 = vadd.f32 %v2190, %v2260
    %2262 = vdwg.mxu0
    %2263 = vmatprep.subr.mxu0 0.0
    %2264 = vmatpush1.msra.mxu0 %v1453
    %2265 = vmatprep.subr.mxu0 0.0
    %2266 = vmatpush1.msra.mxu0 %v1460
    %2267 = vmatprep.subr.mxu0 0.0
    %2268 = vmatpush1.msra.mxu0 %v1467
    %2269 = vmatprep.subr.mxu0 0.0
    %2270 = vmatpush1.msra.mxu0 %v1474
    %2271 = vmatprep.subr.mxu0 0.0
    %2272 = vmatpush1.msra.mxu0 %v1481
    %2273 = vmatprep.subr.mxu0 0.0
    %2274 = vmatpush1.msra.mxu0 %v1488
    %2275 = vmatprep.subr.mxu0 0.0
    %2276 = vmatpush1.msra.mxu0 %v1495
    %2277 = vmatprep.subr.mxu0 0.0
    %2278 = vmatpush1.msra.mxu0 %v1502
    %2279 = vmatprep.subr.mxu0 0.0
    %2280 = vmatpush1.msra.mxu0 %v1509
    %2281 = vmatprep.subr.mxu0 0.0
    %2282 = vmatpush1.msra.mxu0 %v1516
    %2283 = vmatprep.subr.mxu0 0.0
    %2284 = vmatpush1.msra.mxu0 %v1523
    %2285 = vmatprep.subr.mxu0 0.0
    %2286 = vmatpush1.msra.mxu0 %v1530
    %2287 = vmatprep.subr.mxu0 0.0
    %2288 = vmatpush1.msra.mxu0 %v1537
    %2289 = vmatprep.subr.mxu0 0.0
    %2290 = vmatpush1.msra.mxu0 %v1544
    %2291 = vmatprep.subr.mxu0 0.0
    %2292 = vmatpush1.msra.mxu0 %v1551
    %2293 = vmatprep.subr.mxu0 0.0
    %2294 = vmatpush1.msra.mxu0 %v1558
    %2295 = vmatprep.subr.mxu0 0.0
    %2296 = vmatpush1.msra.mxu0 %v1565
    %2297 = vmatprep.subr.mxu0 0.0
    %2298 = vmatpush1.msra.mxu0 %v1572
    %2299 = vmatprep.subr.mxu0 0.0
    %2300 = vmatpush1.msra.mxu0 %v1579
    %2301 = vmatprep.subr.mxu0 0.0
    %2302 = vmatpush1.msra.mxu0 %v1586
    %2303 = vmatprep.subr.mxu0 0.0
    %2304 = vmatpush1.msra.mxu0 %v1593
    %2305 = vmatprep.subr.mxu0 0.0
    %2306 = vmatpush1.msra.mxu0 %v1600
    %2307 = vmatprep.subr.mxu0 0.0
    %2308 = vmatpush1.msra.mxu0 %v1607
    %2309 = vmatprep.subr.mxu0 0.0
    %2310 = vmatpush1.msra.mxu0 %v1614
    %2311 = vmatprep.subr.mxu0 0.0
    %2312 = vmatpush1.msra.mxu0 %v1621
    %2313 = vmatprep.subr.mxu0 0.0
    %2314 = vmatpush1.msra.mxu0 %v1628
    %2315 = vmatprep.subr.mxu0 0.0
    %2316 = vmatpush1.msra.mxu0 %v1635
    %2317 = vmatprep.subr.mxu0 0.0
    %2318 = vmatpush1.msra.mxu0 %v1642
    %2319 = vmatprep.subr.mxu0 0.0
    %2320 = vmatpush1.msra.mxu0 %v1649
    %2321 = vmatprep.subr.mxu0 0.0
    %2322 = vmatpush1.msra.mxu0 %v1656
    %2323 = vmatprep.subr.mxu0 0.0
    %2324 = vmatpush1.msra.mxu0 %v1663
    %2325 = vmatprep.subr.mxu0 0.0
    %2326 = vmatpush1.msra.mxu0 %v1670
    %2327 = vmatprep.mubr.f32.mxu0 %v1444
    %2328 = vmatmul.mubr.f32.gmra.mrb[0].mxu0 %v1443
    %v2329 = vpop.f32.mrb[0].mxu0
    %v2330 = vadd.f32 %v1826, %v2329
    %v2331 = vpop.f32.mrb[0].mxu0
    %2332 = vdwg.mxu0
    %2333 = vmatprep.subr.mxu0 0.0
    %2334 = vmatpush1.msra.mxu0 %v1677
    %2335 = vmatprep.subr.mxu0 0.0
    %2336 = vmatpush1.msra.mxu0 %v1684
    %2337 = vmatprep.subr.mxu0 0.0
    %2338 = vmatpush1.msra.mxu0 %v1691
    %2339 = vmatprep.subr.mxu0 0.0
    %2340 = vmatpush1.msra.mxu0 %v1698
    %2341 = vmatprep.subr.mxu0 0.0
    %2342 = vmatpush1.msra.mxu0 %v1705
    %2343 = vmatprep.subr.mxu0 0.0
    %2344 = vmatpush1.msra.mxu0 %v1712
    %2345 = vmatprep.subr.mxu0 0.0
    %2346 = vmatpush1.msra.mxu0 %v1719
    %2347 = vmatprep.subr.mxu0 0.0
    %2348 = vmatpush1.msra.mxu0 %v1726
    %2349 = vmatprep.subr.mxu0 0.0
    %2350 = vmatpush1.msra.mxu0 %v1733
    %2351 = vmatprep.subr.mxu0 0.0
    %2352 = vmatpush1.msra.mxu0 %v1740
    %2353 = vmatprep.subr.mxu0 0.0
    %2354 = vmatpush1.msra.mxu0 %v1747
    %2355 = vmatprep.subr.mxu0 0.0
    %2356 = vmatpush1.msra.mxu0 %v1754
    %2357 = vmatprep.subr.mxu0 0.0
    %2358 = vmatpush1.msra.mxu0 %v1761
    %2359 = vmatprep.subr.mxu0 0.0
    %2360 = vmatpush1.msra.mxu0 %v1768
    %2361 = vmatprep.subr.mxu0 0.0
    %2362 = vmatpush1.msra.mxu0 %v1775
    %2363 = vmatprep.subr.mxu0 0.0
    %2364 = vmatpush1.msra.mxu0 %v1782
    %2365 = vmatprep.subr.mxu0 0.0
    %2366 = vmatpush1.msra.mxu0 %v1789
    %2367 = vmatprep.subr.mxu0 0.0
    %2368 = vmatpush1.msra.mxu0 %v1796
    %2369 = vmatprep.subr.mxu0 0.0
    %2370 = vmatpush1.msra.mxu0 0.0
    %2371 = vmatprep.subr.mxu0 0.0
    %2372 = vmatpush1.msra.mxu0 0.0
    %2373 = vmatprep.subr.mxu0 0.0
    %2374 = vmatpush1.msra.mxu0 0.0
    %2375 = vmatprep.subr.mxu0 0.0
    %2376 = vmatpush1.msra.mxu0 0.0
    %2377 = vmatprep.subr.mxu0 0.0
    %2378 = vmatpush1.msra.mxu0 0.0
    %2379 = vmatprep.subr.mxu0 0.0
    %2380 = vmatpush1.msra.mxu0 0.0
    %2381 = vmatprep.subr.mxu0 0.0
    %2382 = vmatpush1.msra.mxu0 0.0
    %2383 = vmatprep.subr.mxu0 0.0
    %2384 = vmatpush1.msra.mxu0 0.0
    %2385 = vmatprep.subr.mxu0 0.0
    %2386 = vmatpush1.msra.mxu0 0.0
    %2387 = vmatprep.subr.mxu0 0.0
    %2388 = vmatpush1.msra.mxu0 0.0
    %2389 = vmatprep.subr.mxu0 0.0
    %2390 = vmatpush1.msra.mxu0 0.0
    %2391 = vmatprep.subr.mxu0 0.0
    %2392 = vmatpush1.msra.mxu0 0.0
    %2393 = vmatprep.subr.mxu0 0.0
    %2394 = vmatpush1.msra.mxu0 0.0
    %2395 = vmatprep.subr.mxu0 0.0
    %2396 = vmatpush1.msra.mxu0 0.0
    %2397 = vmatprep.mubr.f32.mxu0 %v1835
    %2398 = vmatmul.mubr.f32.gmra.mrb[0].mxu0 %v1445
    %v2399 = vpop.f32.mrb[0].mxu0
    %v2400 = vadd.f32 %v2330, %v2399
    %v2401 = vpop.f32.mrb[0].mxu0
    %2402 = vdwg.mxu0
    %v2403 = vxor.u32 %v1975, 2147483648
    %v2404 = vxor.u32 %v1977, 2147483648
    %v2405 = vxor.u32 %v2117, 2147483648
    %v2406 = vxor.u32 %v2119, 2147483648
    %v2407 = vxor.u32 %v2259, 2147483648
    %v2408 = vxor.u32 %v2261, 2147483648
    %v2409 = vxor.u32 %v2400, 2147483648
    %v2410 = vmul.f32 %v2403, 1.442695
    %v2411 = vpow.pop %v2410
    %v2412 = vmul.f32 %v2404, 1.442695
    %v2413 = vpow.pop %v2412
    %v2414 = vmul.f32 %v2405, 1.442695
    %v2415 = vpow.pop %v2414
    %v2416 = vmul.f32 %v2406, 1.442695
    %v2417 = vpow.pop %v2416
    %v2418 = vmul.f32 %v2407, 1.442695
    %v2419 = vpow.pop %v2418
    %v2420 = vmul.f32 %v2408, 1.442695
    %v2421 = vpow.pop %v2420
    %v2422 = vmul.f32 %v2409, 1.442695
    %v2423 = vpow.pop %v2422
    %v2424 = vadd.f32 %v2411, 1.0
    %v2425 = vadd.f32 %v2413, 1.0
    %v2426 = vadd.f32 %v2415, 1.0
    %v2427 = vadd.f32 %v2417, 1.0
    %v2428 = vadd.f32 %v2419, 1.0
    %v2429 = vadd.f32 %v2421, 1.0
    %v2430 = vadd.f32 %v2423, 1.0
    %v2431 = vrcp.pop %v2424
    %v2432 = vmul.f32 1.0, %v2431
    %v2433 = vrcp.pop %v2425
    %v2434 = vmul.f32 1.0, %v2433
    %v2435 = vrcp.pop %v2426
    %v2436 = vmul.f32 1.0, %v2435
    %v2437 = vrcp.pop %v2427
    %v2438 = vmul.f32 1.0, %v2437
    %v2439 = vrcp.pop %v2428
    %v2440 = vmul.f32 1.0, %v2439
    %v2441 = vrcp.pop %v2429
    %v2442 = vmul.f32 1.0, %v2441
    %v2443 = vrcp.pop %v2430
    %v2444 = vmul.f32 1.0, %v2443
    %2445 = vst [vmem:[#allocation2] sm:$0xff] %v2432
    %2446 = vst [vmem:[#allocation2 + $0x8] sm:$0xff] %v2434
    %2447 = vst [vmem:[#allocation2 + $0x10] sm:$0xff] %v2436
    %2448 = vst [vmem:[#allocation2 + $0x18] sm:$0xff] %v2438
    %2449 = vst [vmem:[#allocation2 + $0x20] sm:$0xff] %v2440
    %2450 = vst [vmem:[#allocation2 + $0x28] sm:$0xff] %v2442
    %2451 = vst.msk [vmem:[#allocation2 + $0x30] sm:$0xff] %vm459, %v2444
    // Predicated region
    $region42: #{vae_forward.1} parent=1 // pred_check
      _
    $region43: #{vae_forward.1} parent=1 // pred_check_branch
      %2453 = sbr.rel (0) target = $region45
    $region44: #{vae_forward.1} parent=1 // pred_region
      %s2455 = ssub.s32 896, 896
      %2456 = vsyncadd [#allocation3], %s2455
      %s2458 = sshll.u32 [#allocation2], 4
      %s2459 = int_to_ptr.vmem [resolvable:$true] %s2458
      %2461 = dma.vmem_to_hbm [thread:$0]  %s2459, 896, %s10, [#allocation3]
    $region45: #{vae_forward.1} parent=1 // pred_fallthru
      _
    // Predicated region
    $region46: #{vae_forward.1} parent=1 // pred_check
      _
    $region47: #{vae_forward.1} parent=1 // pred_check_branch
      %2463 = sbr.rel (0) target = $region49
    $region48: #{vae_forward.1} parent=1 // pred_region
      _
    $region49: #{vae_forward.1} parent=1 // pred_fallthru
      _
    // Predicated region
    $region50: #{vae_forward.1} parent=1 // pred_check
      _
    $region51: #{vae_forward.1} parent=1 // pred_check_branch
      %2465 = sbr.rel (0) target = $region53
    $region52: #{vae_forward.1} parent=1 // pred_region
      %2466 = dma.done [#allocation3], 896
    $region53: #{vae_forward.1} parent=1 // pred_fallthru
      _
    // Predicated region
    $region54: #{vae_forward.1} parent=1 // pred_check
      _
    $region55: #{vae_forward.1} parent=1 // pred_check_branch
      %2468 = sbr.rel (0) target = $region57
    $region56: #{vae_forward.1} parent=1 // pred_region
      _
    $region57: #{vae_forward.1} parent=1 // pred_fallthru
      _
    %2469 = vsyncpa [#allocation3], 1

</llo_original>
